<compile_context>
chip_gen: v6e
topology: v6e:2x2x1
jax: 0.10.0
libtpu: 0.0.40
codegen_flags: <defaults>
</compile_context>

<pallas_src>
import jax
import jax.numpy as jnp
from jax.experimental import pallas as pl
from jax.experimental.pallas import tpu as pltpu


# ----------------------------------------------------------------------------
# In-kernel helpers
# ----------------------------------------------------------------------------
def _sigmoid(x):
    # exp -> EUP, approximate reciprocal -> EUP vrcp: epilogue stays off VALU.
    return pl.reciprocal(1.0 + jnp.exp(-x), approx=True)


# ----------------------------------------------------------------------------
# Fused feature kernel: conv1 + sigmoid + pool + conv2 + sigmoid + pool.
# Per grid step = one image.  Activation layout is (H, C*W): lane = c*W + w.
# ----------------------------------------------------------------------------
def _features_kernel(x_ref, t1_ref, b1_ref, pr1_ref, pw1_ref,
                     t2_ref, b2_ref, pr2_ref, pw2_ref, o_ref):
    x = x_ref[0]                                       # (32, 32) padded image

    # conv1 (1->6, 5x5, padding pre-applied): 5 row-shifted MXU matmuls.
    acc1 = jnp.zeros((28, 6 * 28), jnp.float32)        # (28, 168)
    for ki in range(5):
        acc1 = acc1 + jnp.dot(x[ki:ki + 28, :], t1_ref[ki],
                              preferred_element_type=jnp.float32)
    y1 = _sigmoid(acc1 + b1_ref[...])                  # (28, 168)

    # avgpool 2x2 == two matmuls (rows, then block-diagonal over lanes).
    p1 = jnp.dot(pr1_ref[...], y1, preferred_element_type=jnp.float32)   # (14, 168)
    p1 = jnp.dot(p1, pw1_ref[...], preferred_element_type=jnp.float32)   # (14, 84)

    # conv2 (6->16, 5x5, valid): 5 row-shifted MXU matmuls on (H, Cin*W) slab.
    acc2 = jnp.zeros((10, 16 * 10), jnp.float32)       # (10, 160)
    for ki in range(5):
        acc2 = acc2 + jnp.dot(p1[ki:ki + 10, :], t2_ref[ki],
                              preferred_element_type=jnp.float32)
    y2 = _sigmoid(acc2 + b2_ref[...])                  # (10, 160)

    # avgpool 2x2.
    p2 = jnp.dot(pr2_ref[...], y2, preferred_element_type=jnp.float32)   # (5, 160)
    p2 = jnp.dot(p2, pw2_ref[...], preferred_element_type=jnp.float32)   # (5, 80)

    o_ref[0] = p2                                      # (5, 80) = (H', Cout*W')


def _features_call(x_pad, kp):
    B = x_pad.shape[0]
    t1, b1, pr1, pw1 = kp["t1"], kp["b1_lanes"], kp["pr1"], kp["pw1"]
    t2, b2, pr2, pw2 = kp["t2"], kp["b2_lanes"], kp["pr2"], kp["pw2"]

    flops = B * (5 * 2 * 28 * 32 * 168 + 2 * 14 * 28 * 168 + 2 * 14 * 168 * 84
                 + 5 * 2 * 10 * 84 * 160 + 2 * 5 * 10 * 160 + 2 * 5 * 160 * 80)
    transcend = B * 2 * (28 * 168 + 10 * 160)
    bytes_acc = 4 * (B * (32 * 32 + 5 * 80) + t1.size + b1.size + pr1.size
                     + pw1.size + t2.size + b2.size + pr2.size + pw2.size)

    return pl.pallas_call(
        _features_kernel,
        out_shape=jax.ShapeDtypeStruct((B, 5, 80), jnp.float32),
        grid=(B,),
        in_specs=[
            pl.BlockSpec((1, 32, 32), lambda b: (b, 0, 0)),     # image b
            pl.BlockSpec((5, 32, 168), lambda b: (0, 0, 0)),    # conv1 banded W
            pl.BlockSpec((1, 168), lambda b: (0, 0)),           # conv1 bias lanes
            pl.BlockSpec((14, 28), lambda b: (0, 0)),           # pool1 (rows)
            pl.BlockSpec((168, 84), lambda b: (0, 0)),          # pool1 (lanes)
            pl.BlockSpec((5, 84, 160), lambda b: (0, 0, 0)),    # conv2 banded W
            pl.BlockSpec((1, 160), lambda b: (0, 0)),           # conv2 bias lanes
            pl.BlockSpec((5, 10), lambda b: (0, 0)),            # pool2 (rows)
            pl.BlockSpec((160, 80), lambda b: (0, 0)),          # pool2 (lanes)
        ],
        out_specs=pl.BlockSpec((1, 5, 80), lambda b: (b, 0, 0)),
        compiler_params=pltpu.CompilerParams(
            dimension_semantics=("parallel",),
            vmem_limit_bytes=32 * 1024 * 1024),
        cost_estimate=pl.CostEstimate(flops=flops, transcendentals=transcend,
                                      bytes_accessed=bytes_acc),
    )(x_pad, t1, b1, pr1, pw1, t2, b2, pr2, pw2)


# ----------------------------------------------------------------------------
# Fused fc1 + fc2 + fc3 kernel (weights VMEM-resident, h1/h2 never hit HBM).
# ----------------------------------------------------------------------------
def _fc_kernel(emb_ref, w1_ref, b1_ref, w2_ref, b2_ref, w3_ref, b3_ref, o_ref):
    h = _sigmoid(jnp.dot(emb_ref[...], w1_ref[...],
                         preferred_element_type=jnp.float32) + b1_ref[...])
    h = _sigmoid(jnp.dot(h, w2_ref[...],
                         preferred_element_type=jnp.float32) + b2_ref[...])
    h = _sigmoid(jnp.dot(h, w3_ref[...],
                         preferred_element_type=jnp.float32) + b3_ref[...])
    o_ref[...] = h


def _fc_call(emb, kp):
    B, K = emb.shape
    w1, b1 = kp["w_fc1_t"], kp["b_fc1_r"]
    w2, b2 = kp["w_fc2_t"], kp["b_fc2_r"]
    w3, b3 = kp["w_fc3_t"], kp["b_fc3_r"]
    h1, h2, nc = w1.shape[1], w2.shape[1], w3.shape[1]

    tb = B if B <= 128 else 128            # block row dim == B, or multiple of 8
    grid = (pl.cdiv(B, tb),)

    flops = 2 * B * (K * h1 + h1 * h2 + h2 * nc)
    transcend = 2 * B * (h1 + h2 + nc)
    bytes_acc = 4 * (B * (K + nc) + w1.size + w2.size + w3.size
                     + b1.size + b2.size + b3.size)

    return pl.pallas_call(
        _fc_kernel,
        out_shape=jax.ShapeDtypeStruct((B, nc), jnp.float32),
        grid=grid,
        in_specs=[
            pl.BlockSpec((tb, K), lambda i: (i, 0)),
            pl.BlockSpec((K, h1), lambda i: (0, 0)),
            pl.BlockSpec((1, h1), lambda i: (0, 0)),
            pl.BlockSpec((h1, h2), lambda i: (0, 0)),
            pl.BlockSpec((1, h2), lambda i: (0, 0)),
            pl.BlockSpec((h2, nc), lambda i: (0, 0)),
            pl.BlockSpec((1, nc), lambda i: (0, 0)),
        ],
        out_specs=pl.BlockSpec((tb, nc), lambda i: (i, 0)),
        compiler_params=pltpu.CompilerParams(
            dimension_semantics=("parallel",),
            vmem_limit_bytes=32 * 1024 * 1024),
        cost_estimate=pl.CostEstimate(flops=flops, transcendentals=transcend,
                                      bytes_accessed=bytes_acc),
    )(emb, w1, b1, w2, b2, w3, b3)


# ----------------------------------------------------------------------------
# One-time parameter preparation (pre-transposed / banded / pooling matrices)
# ----------------------------------------------------------------------------
def _pool_half(n):
    """(n//2, n) matrix P with P[i, 2i] = P[i, 2i+1] = 0.5 (2x row avg-pool)."""
    rows = jnp.arange(n // 2)[:, None]
    cols = jnp.arange(n)[None, :]
    return jnp.where(cols // 2 == rows, 0.5, 0.0).astype(jnp.float32)


def _banded_conv_matrices(weight, in_w, out_w):
    """Expand a (Cout, Cin, KH, KW) conv weight into KH banded matrices.

    Returns T of shape (KH, Cin*in_w, Cout*out_w) with
      T[ki, ci*in_w + u, co*out_w + ow] = weight[co, ci, ki, u - ow]
    for 0 <= u - ow < KW (else 0), so that for an (H, Cin*W) activation slab
      conv_preact[oh, co*out_w + ow] = sum_ki (slab[ki:ki+OH, :] @ T[ki]).
    """
    cout, cin, kh, kw = weight.shape
    u = jnp.arange(in_w)[:, None]
    ow = jnp.arange(out_w)[None, :]
    d = u - ow
    valid = (d >= 0) & (d < kw)
    dc = jnp.clip(d, 0, kw - 1)
    mats = []
    for ki in range(kh):
        wk = weight[:, :, ki, :]                       # (Cout, Cin, KW)
        vals = wk[:, :, dc]                            # (Cout, Cin, in_w, out_w)
        vals = jnp.where(valid[None, None], vals, 0.0)
        mats.append(jnp.transpose(vals, (1, 2, 0, 3)).reshape(cin * in_w,
                                                              cout * out_w))
    return jnp.stack(mats, axis=0).astype(jnp.float32)


def prepare_params(params):
    """Convert PyTorch-layout params into kernel-ready layout, once."""
    return {
        # conv1: 1->6, padded input width 32, output width 28
        "t1": _banded_conv_matrices(params["w_conv1"], 32, 28),      # (5,32,168)
        "b1_lanes": jnp.repeat(params["b_conv1"], 28).reshape(1, 168),
        "pr1": _pool_half(28),                                       # (14,28)
        "pw1": jnp.kron(jnp.eye(6, dtype=jnp.float32),
                        _pool_half(28).T),                           # (168,84)
        # conv2: 6->16, input width 14, output width 10
        "t2": _banded_conv_matrices(params["w_conv2"], 14, 10),      # (5,84,160)
        "b2_lanes": jnp.repeat(params["b_conv2"], 10).reshape(1, 160),
        "pr2": _pool_half(10),                                       # (5,10)
        "pw2": jnp.kron(jnp.eye(16, dtype=jnp.float32),
                        _pool_half(10).T),                           # (160,80)
        # fc weights pre-transposed to (K, N); biases as (1, N)
        "w_fc1_t": params["w_fc1"].T, "b_fc1_r": params["b_fc1"].reshape(1, -1),
        "w_fc2_t": params["w_fc2"].T, "b_fc2_r": params["b_fc2"].reshape(1, -1),
        "w_fc3_t": params["w_fc3"].T, "b_fc3_r": params["b_fc3"].reshape(1, -1),
    }


# ----------------------------------------------------------------------------
# LeNet forward
# ----------------------------------------------------------------------------
def lenet_forward(x_nchw, kp):
    B = x_nchw.shape[0]
    # conv1 padding=2 applied once at the boundary (tiny); single input channel.
    x_pad = jnp.pad(x_nchw[:, 0].astype(jnp.float32),
                    ((0, 0), (2, 2), (2, 2)))                        # (B,32,32)
    p2 = _features_call(x_pad, kp)                                   # (B,5,80)
    # flatten to PyTorch (C, H, W) order for the returned embedding
    emb = jnp.transpose(p2.reshape(B, 5, 16, 5), (0, 2, 1, 3)).reshape(B, 400)
    out = _fc_call(emb, kp)
    return out, emb


def init_params(key, num_out_classes=10):
    ks = jax.random.split(key, 12)

    def uni(k, shape, fan_in):
        bound = 1.0 / jnp.sqrt(float(fan_in))
        return jax.random.uniform(k, shape, jnp.float32, -bound, bound)

    return {
        "w_conv1": uni(ks[0], (6, 1, 5, 5), 1 * 5 * 5),
        "b_conv1": uni(ks[1], (6,), 1 * 5 * 5),
        "w_conv2": uni(ks[2], (16, 6, 5, 5), 6 * 5 * 5),
        "b_conv2": uni(ks[3], (16,), 6 * 5 * 5),
        "w_fc1": uni(ks[4], (120, 400), 400),
        "b_fc1": uni(ks[5], (120,), 400),
        "w_fc2": uni(ks[6], (84, 120), 120),
        "b_fc2": uni(ks[7], (84,), 120),
        "w_fc3": uni(ks[8], (num_out_classes, 84), 84),
        "b_fc3": uni(ks[9], (num_out_classes,), 84),
    }


# ----------------------------------------------------------------------------
# Plain-JAX reference of the PyTorch module (for numerical sanity check)
# ----------------------------------------------------------------------------
def _reference_forward(x_nchw, params):
    hi = jax.lax.Precision.HIGHEST

    def conv(x, w, b, pad):
        if pad:
            x = jnp.pad(x, ((0, 0), (0, 0), (pad, pad), (pad, pad)))
        cout, cin, kh, kw = w.shape
        B, C, H, W = x.shape
        Ho, Wo = H - kh + 1, W - kw + 1
        cols = [x[:, c, i:i + Ho, j:j + Wo]
                for c in range(C) for i in range(kh) for j in range(kw)]
        patches = jnp.stack(cols, -1).reshape(B * Ho * Wo, -1)
        y = jnp.dot(patches, w.reshape(cout, -1).T, precision=hi) + b
        return jnp.transpose(y.reshape(B, Ho, Wo, cout), (0, 3, 1, 2))

    def pool(x):
        B, C, H, W = x.shape
        return x.reshape(B, C, H // 2, 2, W // 2, 2).mean((3, 5))

    def sig(v):
        return 1.0 / (1.0 + jnp.exp(-v))

    y = pool(sig(conv(x_nchw, params["w_conv1"], params["b_conv1"], 2)))
    y = pool(sig(conv(y, params["w_conv2"], params["b_conv2"], 0)))
    emb = y.reshape(y.shape[0], -1)
    h = sig(jnp.dot(emb, params["w_fc1"].T, precision=hi) + params["b_fc1"])
    h = sig(jnp.dot(h, params["w_fc2"].T, precision=hi) + params["b_fc2"])
    h = sig(jnp.dot(h, params["w_fc3"].T, precision=hi) + params["b_fc3"])
    return h, emb


if __name__ == "__main__":
    key = jax.random.PRNGKey(0)
    k_params, k_x = jax.random.split(key)

    num_out_classes = 10
    params = init_params(k_params, num_out_classes)
    kparams = prepare_params(params)      # one-time layout prep (outside jit)

    # LeNet's fc1 dimension (5*5*16) fixes the spatial size at 28x28.
    x = jax.random.normal(k_x, (2, 1, 28, 28), dtype=jnp.float32)

    fwd = jax.jit(lenet_forward)
    out, emb = fwd(x, kparams)
    jax.block_until_ready((out, emb))

    assert out.shape == (2, num_out_classes), out.shape
    assert emb.shape == (2, 400), emb.shape

    # Numerical sanity check against the plain-JAX reference.
    ref_out, ref_emb = _reference_forward(x, params)
    assert jnp.allclose(out, ref_out, atol=2e-2), \
        float(jnp.max(jnp.abs(out - ref_out)))
    assert jnp.allclose(emb, ref_emb, atol=2e-2), \
        float(jnp.max(jnp.abs(emb - ref_emb)))

    print("KERNEL_OK")
</pallas_src>

<mosaic_0001>
module attributes {stable_mosaic.version = 11 : i64} {
  func.func @_features_kernel(%arg0: i32, %arg1: memref<1x32x32xf32, #tpu.memory_space<vmem>>, %arg2: memref<5x32x168xf32, #tpu.memory_space<vmem>>, %arg3: memref<1x168xf32, #tpu.memory_space<vmem>>, %arg4: memref<14x28xf32, #tpu.memory_space<vmem>>, %arg5: memref<168x84xf32, #tpu.memory_space<vmem>>, %arg6: memref<5x84x160xf32, #tpu.memory_space<vmem>>, %arg7: memref<1x160xf32, #tpu.memory_space<vmem>>, %arg8: memref<5x10xf32, #tpu.memory_space<vmem>>, %arg9: memref<160x80xf32, #tpu.memory_space<vmem>>, %arg10: memref<1x5x80xf32, #tpu.memory_space<vmem>>) attributes {dimension_semantics = [#tpu.dimension_semantics<parallel>], iteration_bounds = array<i64: 2>, scalar_prefetch = 0 : i64, scratch_operands = 0 : i64, tpu.core_type = #tpu.core_type<tc>, window_params = [{transform_indices = @transform_0, window_bounds = array<i64: 1, 32, 32>}, {pipeline_mode = #tpu.pipeline_mode<synchronous>, transform_indices = @transform_1, window_bounds = array<i64: 5, 32, 168>}, {pipeline_mode = #tpu.pipeline_mode<synchronous>, transform_indices = @transform_2, window_bounds = array<i64: 1, 168>}, {pipeline_mode = #tpu.pipeline_mode<synchronous>, transform_indices = @transform_3, window_bounds = array<i64: 14, 28>}, {pipeline_mode = #tpu.pipeline_mode<synchronous>, transform_indices = @transform_4, window_bounds = array<i64: 168, 84>}, {pipeline_mode = #tpu.pipeline_mode<synchronous>, transform_indices = @transform_5, window_bounds = array<i64: 5, 84, 160>}, {pipeline_mode = #tpu.pipeline_mode<synchronous>, transform_indices = @transform_6, window_bounds = array<i64: 1, 160>}, {pipeline_mode = #tpu.pipeline_mode<synchronous>, transform_indices = @transform_7, window_bounds = array<i64: 5, 10>}, {pipeline_mode = #tpu.pipeline_mode<synchronous>, transform_indices = @transform_8, window_bounds = array<i64: 160, 80>}, {transform_indices = @transform_9, window_bounds = array<i64: 1, 5, 80>}]} {
    %c0 = arith.constant 0 : index
    %c0_0 = arith.constant 0 : index
    %c0_1 = arith.constant 0 : index
    %0 = vector.load %arg1[%c0, %c0_0, %c0_1] : memref<1x32x32xf32, #tpu.memory_space<vmem>>, vector<1x32x32xf32>
    %1 = vector.shape_cast %0 : vector<1x32x32xf32> to vector<32x32xf32>
    %cst = arith.constant 0.000000e+00 : f32
    %2 = vector.broadcast %cst : f32 to vector<28x168xf32>
    %3 = vector.extract_strided_slice %1 {offsets = [0, 0], sizes = [28, 32], strides = [1, 1]} : vector<32x32xf32> to vector<28x32xf32>
    %c0_2 = arith.constant 0 : index
    %c0_3 = arith.constant 0 : index
    %c0_4 = arith.constant 0 : index
    %4 = vector.load %arg2[%c0_2, %c0_3, %c0_4] : memref<5x32x168xf32, #tpu.memory_space<vmem>>, vector<1x32x168xf32>
    %5 = vector.shape_cast %4 : vector<1x32x168xf32> to vector<32x168xf32>
    %cst_5 = arith.constant dense<0.000000e+00> : vector<28x168xf32>
    %6 = tpu.matmul %3, %5, %cst_5 {dimension_numbers = #tpu.dot_dimension_numbers<[1], [0], [0], [1], [0, 0, 1, 1], [], []>} : vector<28x32xf32>, vector<32x168xf32>, vector<28x168xf32> -> vector<28x168xf32>
    %7 = arith.addf %2, %6 : vector<28x168xf32>
    %8 = vector.extract_strided_slice %1 {offsets = [1, 0], sizes = [28, 32], strides = [1, 1]} : vector<32x32xf32> to vector<28x32xf32>
    %c1 = arith.constant 1 : index
    %c0_6 = arith.constant 0 : index
    %c0_7 = arith.constant 0 : index
    %9 = vector.load %arg2[%c1, %c0_6, %c0_7] : memref<5x32x168xf32, #tpu.memory_space<vmem>>, vector<1x32x168xf32>
    %10 = vector.shape_cast %9 : vector<1x32x168xf32> to vector<32x168xf32>
    %cst_8 = arith.constant dense<0.000000e+00> : vector<28x168xf32>
    %11 = tpu.matmul %8, %10, %cst_8 {dimension_numbers = #tpu.dot_dimension_numbers<[1], [0], [0], [1], [0, 0, 1, 1], [], []>} : vector<28x32xf32>, vector<32x168xf32>, vector<28x168xf32> -> vector<28x168xf32>
    %12 = arith.addf %7, %11 : vector<28x168xf32>
    %13 = vector.extract_strided_slice %1 {offsets = [2, 0], sizes = [28, 32], strides = [1, 1]} : vector<32x32xf32> to vector<28x32xf32>
    %c2 = arith.constant 2 : index
    %c0_9 = arith.constant 0 : index
    %c0_10 = arith.constant 0 : index
    %14 = vector.load %arg2[%c2, %c0_9, %c0_10] : memref<5x32x168xf32, #tpu.memory_space<vmem>>, vector<1x32x168xf32>
    %15 = vector.shape_cast %14 : vector<1x32x168xf32> to vector<32x168xf32>
    %cst_11 = arith.constant dense<0.000000e+00> : vector<28x168xf32>
    %16 = tpu.matmul %13, %15, %cst_11 {dimension_numbers = #tpu.dot_dimension_numbers<[1], [0], [0], [1], [0, 0, 1, 1], [], []>} : vector<28x32xf32>, vector<32x168xf32>, vector<28x168xf32> -> vector<28x168xf32>
    %17 = arith.addf %12, %16 : vector<28x168xf32>
    %18 = vector.extract_strided_slice %1 {offsets = [3, 0], sizes = [28, 32], strides = [1, 1]} : vector<32x32xf32> to vector<28x32xf32>
    %c3 = arith.constant 3 : index
    %c0_12 = arith.constant 0 : index
    %c0_13 = arith.constant 0 : index
    %19 = vector.load %arg2[%c3, %c0_12, %c0_13] : memref<5x32x168xf32, #tpu.memory_space<vmem>>, vector<1x32x168xf32>
    %20 = vector.shape_cast %19 : vector<1x32x168xf32> to vector<32x168xf32>
    %cst_14 = arith.constant dense<0.000000e+00> : vector<28x168xf32>
    %21 = tpu.matmul %18, %20, %cst_14 {dimension_numbers = #tpu.dot_dimension_numbers<[1], [0], [0], [1], [0, 0, 1, 1], [], []>} : vector<28x32xf32>, vector<32x168xf32>, vector<28x168xf32> -> vector<28x168xf32>
    %22 = arith.addf %17, %21 : vector<28x168xf32>
    %23 = vector.extract_strided_slice %1 {offsets = [4, 0], sizes = [28, 32], strides = [1, 1]} : vector<32x32xf32> to vector<28x32xf32>
    %c4 = arith.constant 4 : index
    %c0_15 = arith.constant 0 : index
    %c0_16 = arith.constant 0 : index
    %24 = vector.load %arg2[%c4, %c0_15, %c0_16] : memref<5x32x168xf32, #tpu.memory_space<vmem>>, vector<1x32x168xf32>
    %25 = vector.shape_cast %24 : vector<1x32x168xf32> to vector<32x168xf32>
    %cst_17 = arith.constant dense<0.000000e+00> : vector<28x168xf32>
    %26 = tpu.matmul %23, %25, %cst_17 {dimension_numbers = #tpu.dot_dimension_numbers<[1], [0], [0], [1], [0, 0, 1, 1], [], []>} : vector<28x32xf32>, vector<32x168xf32>, vector<28x168xf32> -> vector<28x168xf32>
    %27 = arith.addf %22, %26 : vector<28x168xf32>
    %c0_18 = arith.constant 0 : index
    %c0_19 = arith.constant 0 : index
    %28 = vector.load %arg3[%c0_18, %c0_19] : memref<1x168xf32, #tpu.memory_space<vmem>>, vector<1x168xf32>
    %29 = vector.broadcast %28 : vector<1x168xf32> to vector<28x168xf32>
    %30 = arith.addf %27, %29 : vector<28x168xf32>
    %cst_20 = arith.constant 0.000000e+00 : f32
    %31 = vector.broadcast %cst_20 : f32 to vector<28x168xf32>
    %32 = arith.subf %31, %30 : vector<28x168xf32>
    %33 = math.exp %32 : vector<28x168xf32>
    %cst_21 = arith.constant 1.000000e+00 : f32
    %34 = vector.broadcast %cst_21 : f32 to vector<28x168xf32>
    %35 = arith.addf %34, %33 : vector<28x168xf32>
    %36 = tpu.reciprocal %35 {approx = true} : vector<28x168xf32> -> vector<28x168xf32>
    %c0_22 = arith.constant 0 : index
    %c0_23 = arith.constant 0 : index
    %37 = vector.load %arg4[%c0_22, %c0_23] : memref<14x28xf32, #tpu.memory_space<vmem>>, vector<14x28xf32>
    %cst_24 = arith.constant dense<0.000000e+00> : vector<14x168xf32>
    %38 = tpu.matmul %37, %36, %cst_24 {dimension_numbers = #tpu.dot_dimension_numbers<[1], [0], [0], [1], [0, 0, 1, 1], [], []>} : vector<14x28xf32>, vector<28x168xf32>, vector<14x168xf32> -> vector<14x168xf32>
    %c0_25 = arith.constant 0 : index
    %c0_26 = arith.constant 0 : index
    %39 = vector.load %arg5[%c0_25, %c0_26] : memref<168x84xf32, #tpu.memory_space<vmem>>, vector<168x84xf32>
    %cst_27 = arith.constant dense<0.000000e+00> : vector<14x84xf32>
    %40 = tpu.matmul %38, %39, %cst_27 {dimension_numbers = #tpu.dot_dimension_numbers<[1], [0], [0], [1], [0, 0, 1, 1], [], []>} : vector<14x168xf32>, vector<168x84xf32>, vector<14x84xf32> -> vector<14x84xf32>
    %cst_28 = arith.constant 0.000000e+00 : f32
    %41 = vector.broadcast %cst_28 : f32 to vector<10x160xf32>
    %42 = vector.extract_strided_slice %40 {offsets = [0, 0], sizes = [10, 84], strides = [1, 1]} : vector<14x84xf32> to vector<10x84xf32>
    %c0_29 = arith.constant 0 : index
    %c0_30 = arith.constant 0 : index
    %c0_31 = arith.constant 0 : index
    %43 = vector.load %arg6[%c0_29, %c0_30, %c0_31] : memref<5x84x160xf32, #tpu.memory_space<vmem>>, vector<1x84x160xf32>
    %44 = vector.shape_cast %43 : vector<1x84x160xf32> to vector<84x160xf32>
    %cst_32 = arith.constant dense<0.000000e+00> : vector<10x160xf32>
    %45 = tpu.matmul %42, %44, %cst_32 {dimension_numbers = #tpu.dot_dimension_numbers<[1], [0], [0], [1], [0, 0, 1, 1], [], []>} : vector<10x84xf32>, vector<84x160xf32>, vector<10x160xf32> -> vector<10x160xf32>
    %46 = arith.addf %41, %45 : vector<10x160xf32>
    %47 = vector.extract_strided_slice %40 {offsets = [1, 0], sizes = [10, 84], strides = [1, 1]} : vector<14x84xf32> to vector<10x84xf32>
    %c1_33 = arith.constant 1 : index
    %c0_34 = arith.constant 0 : index
    %c0_35 = arith.constant 0 : index
    %48 = vector.load %arg6[%c1_33, %c0_34, %c0_35] : memref<5x84x160xf32, #tpu.memory_space<vmem>>, vector<1x84x160xf32>
    %49 = vector.shape_cast %48 : vector<1x84x160xf32> to vector<84x160xf32>
    %cst_36 = arith.constant dense<0.000000e+00> : vector<10x160xf32>
    %50 = tpu.matmul %47, %49, %cst_36 {dimension_numbers = #tpu.dot_dimension_numbers<[1], [0], [0], [1], [0, 0, 1, 1], [], []>} : vector<10x84xf32>, vector<84x160xf32>, vector<10x160xf32> -> vector<10x160xf32>
    %51 = arith.addf %46, %50 : vector<10x160xf32>
    %52 = vector.extract_strided_slice %40 {offsets = [2, 0], sizes = [10, 84], strides = [1, 1]} : vector<14x84xf32> to vector<10x84xf32>
    %c2_37 = arith.constant 2 : index
    %c0_38 = arith.constant 0 : index
    %c0_39 = arith.constant 0 : index
    %53 = vector.load %arg6[%c2_37, %c0_38, %c0_39] : memref<5x84x160xf32, #tpu.memory_space<vmem>>, vector<1x84x160xf32>
    %54 = vector.shape_cast %53 : vector<1x84x160xf32> to vector<84x160xf32>
    %cst_40 = arith.constant dense<0.000000e+00> : vector<10x160xf32>
    %55 = tpu.matmul %52, %54, %cst_40 {dimension_numbers = #tpu.dot_dimension_numbers<[1], [0], [0], [1], [0, 0, 1, 1], [], []>} : vector<10x84xf32>, vector<84x160xf32>, vector<10x160xf32> -> vector<10x160xf32>
    %56 = arith.addf %51, %55 : vector<10x160xf32>
    %57 = vector.extract_strided_slice %40 {offsets = [3, 0], sizes = [10, 84], strides = [1, 1]} : vector<14x84xf32> to vector<10x84xf32>
    %c3_41 = arith.constant 3 : index
    %c0_42 = arith.constant 0 : index
    %c0_43 = arith.constant 0 : index
    %58 = vector.load %arg6[%c3_41, %c0_42, %c0_43] : memref<5x84x160xf32, #tpu.memory_space<vmem>>, vector<1x84x160xf32>
    %59 = vector.shape_cast %58 : vector<1x84x160xf32> to vector<84x160xf32>
    %cst_44 = arith.constant dense<0.000000e+00> : vector<10x160xf32>
    %60 = tpu.matmul %57, %59, %cst_44 {dimension_numbers = #tpu.dot_dimension_numbers<[1], [0], [0], [1], [0, 0, 1, 1], [], []>} : vector<10x84xf32>, vector<84x160xf32>, vector<10x160xf32> -> vector<10x160xf32>
    %61 = arith.addf %56, %60 : vector<10x160xf32>
    %62 = vector.extract_strided_slice %40 {offsets = [4, 0], sizes = [10, 84], strides = [1, 1]} : vector<14x84xf32> to vector<10x84xf32>
    %c4_45 = arith.constant 4 : index
    %c0_46 = arith.constant 0 : index
    %c0_47 = arith.constant 0 : index
    %63 = vector.load %arg6[%c4_45, %c0_46, %c0_47] : memref<5x84x160xf32, #tpu.memory_space<vmem>>, vector<1x84x160xf32>
    %64 = vector.shape_cast %63 : vector<1x84x160xf32> to vector<84x160xf32>
    %cst_48 = arith.constant dense<0.000000e+00> : vector<10x160xf32>
    %65 = tpu.matmul %62, %64, %cst_48 {dimension_numbers = #tpu.dot_dimension_numbers<[1], [0], [0], [1], [0, 0, 1, 1], [], []>} : vector<10x84xf32>, vector<84x160xf32>, vector<10x160xf32> -> vector<10x160xf32>
    %66 = arith.addf %61, %65 : vector<10x160xf32>
    %c0_49 = arith.constant 0 : index
    %c0_50 = arith.constant 0 : index
    %67 = vector.load %arg7[%c0_49, %c0_50] : memref<1x160xf32, #tpu.memory_space<vmem>>, vector<1x160xf32>
    %68 = vector.broadcast %67 : vector<1x160xf32> to vector<10x160xf32>
    %69 = arith.addf %66, %68 : vector<10x160xf32>
    %cst_51 = arith.constant 0.000000e+00 : f32
    %70 = vector.broadcast %cst_51 : f32 to vector<10x160xf32>
    %71 = arith.subf %70, %69 : vector<10x160xf32>
    %72 = math.exp %71 : vector<10x160xf32>
    %cst_52 = arith.constant 1.000000e+00 : f32
    %73 = vector.broadcast %cst_52 : f32 to vector<10x160xf32>
    %74 = arith.addf %73, %72 : vector<10x160xf32>
    %75 = tpu.reciprocal %74 {approx = true} : vector<10x160xf32> -> vector<10x160xf32>
    %c0_53 = arith.constant 0 : index
    %c0_54 = arith.constant 0 : index
    %76 = vector.load %arg8[%c0_53, %c0_54] : memref<5x10xf32, #tpu.memory_space<vmem>>, vector<5x10xf32>
    %cst_55 = arith.constant dense<0.000000e+00> : vector<5x160xf32>
    %77 = tpu.matmul %76, %75, %cst_55 {dimension_numbers = #tpu.dot_dimension_numbers<[1], [0], [0], [1], [0, 0, 1, 1], [], []>} : vector<5x10xf32>, vector<10x160xf32>, vector<5x160xf32> -> vector<5x160xf32>
    %c0_56 = arith.constant 0 : index
    %c0_57 = arith.constant 0 : index
    %78 = vector.load %arg9[%c0_56, %c0_57] : memref<160x80xf32, #tpu.memory_space<vmem>>, vector<160x80xf32>
    %cst_58 = arith.constant dense<0.000000e+00> : vector<5x80xf32>
    %79 = tpu.matmul %77, %78, %cst_58 {dimension_numbers = #tpu.dot_dimension_numbers<[1], [0], [0], [1], [0, 0, 1, 1], [], []>} : vector<5x160xf32>, vector<160x80xf32>, vector<5x80xf32> -> vector<5x80xf32>
    %c0_59 = arith.constant 0 : index
    %c0_60 = arith.constant 0 : index
    %c0_61 = arith.constant 0 : index
    %80 = vector.load %arg10[%c0_59, %c0_60, %c0_61] : memref<1x5x80xf32, #tpu.memory_space<vmem>>, vector<1x5x80xf32>
    %81 = vector.shape_cast %80 : vector<1x5x80xf32> to vector<5x80xf32>
    %82 = vector.shape_cast %79 : vector<5x80xf32> to vector<1x5x80xf32>
    tpu.vector_store %arg10[%c0_59, %c0_60, %c0_61], %82 {strides = array<i32>} : memref<1x5x80xf32, #tpu.memory_space<vmem>>, vector<1x5x80xf32>,
    return
  }
  func.func @transform_0(%arg0: i32) -> (i32, i32, i32) {
    %c0_i32 = arith.constant 0 : i32
    %c0_i32_0 = arith.constant 0 : i32
    %c0_i32_1 = arith.constant 0 : i32
    return %arg0, %c0_i32, %c0_i32_0 : i32, i32, i32
  }
  func.func @transform_1(%arg0: i32) -> (i32, i32, i32) {
    %c0_i32 = arith.constant 0 : i32
    %c0_i32_0 = arith.constant 0 : i32
    %c0_i32_1 = arith.constant 0 : i32
    %c0_i32_2 = arith.constant 0 : i32
    return %c0_i32, %c0_i32_0, %c0_i32_1 : i32, i32, i32
  }
  func.func @transform_2(%arg0: i32) -> (i32, i32) {
    %c0_i32 = arith.constant 0 : i32
    %c0_i32_0 = arith.constant 0 : i32
    %c0_i32_1 = arith.constant 0 : i32
    return %c0_i32, %c0_i32_0 : i32, i32
  }
  func.func @transform_3(%arg0: i32) -> (i32, i32) {
    %c0_i32 = arith.constant 0 : i32
    %c0_i32_0 = arith.constant 0 : i32
    %c0_i32_1 = arith.constant 0 : i32
    return %c0_i32, %c0_i32_0 : i32, i32
  }
  func.func @transform_4(%arg0: i32) -> (i32, i32) {
    %c0_i32 = arith.constant 0 : i32
    %c0_i32_0 = arith.constant 0 : i32
    %c0_i32_1 = arith.constant 0 : i32
    return %c0_i32, %c0_i32_0 : i32, i32
  }
  func.func @transform_5(%arg0: i32) -> (i32, i32, i32) {
    %c0_i32 = arith.constant 0 : i32
    %c0_i32_0 = arith.constant 0 : i32
    %c0_i32_1 = arith.constant 0 : i32
    %c0_i32_2 = arith.constant 0 : i32
    return %c0_i32, %c0_i32_0, %c0_i32_1 : i32, i32, i32
  }
  func.func @transform_6(%arg0: i32) -> (i32, i32) {
    %c0_i32 = arith.constant 0 : i32
    %c0_i32_0 = arith.constant 0 : i32
    %c0_i32_1 = arith.constant 0 : i32
    return %c0_i32, %c0_i32_0 : i32, i32
  }
  func.func @transform_7(%arg0: i32) -> (i32, i32) {
    %c0_i32 = arith.constant 0 : i32
    %c0_i32_0 = arith.constant 0 : i32
    %c0_i32_1 = arith.constant 0 : i32
    return %c0_i32, %c0_i32_0 : i32, i32
  }
  func.func @transform_8(%arg0: i32) -> (i32, i32) {
    %c0_i32 = arith.constant 0 : i32
    %c0_i32_0 = arith.constant 0 : i32
    %c0_i32_1 = arith.constant 0 : i32
    return %c0_i32, %c0_i32_0 : i32, i32
  }
  func.func @transform_9(%arg0: i32) -> (i32, i32, i32) {
    %c0_i32 = arith.constant 0 : i32
    %c0_i32_0 = arith.constant 0 : i32
    %c0_i32_1 = arith.constant 0 : i32
    return %arg0, %c0_i32, %c0_i32_0 : i32, i32, i32
  }
}

module attributes {stable_mosaic.version = 11 : i64} {
  func.func @_fc_kernel(%arg0: i32, %arg1: memref<2x400xf32, #tpu.memory_space<vmem>>, %arg2: memref<400x120xf32, #tpu.memory_space<vmem>>, %arg3: memref<1x120xf32, #tpu.memory_space<vmem>>, %arg4: memref<120x84xf32, #tpu.memory_space<vmem>>, %arg5: memref<1x84xf32, #tpu.memory_space<vmem>>, %arg6: memref<84x10xf32, #tpu.memory_space<vmem>>, %arg7: memref<1x10xf32, #tpu.memory_space<vmem>>, %arg8: memref<2x10xf32, #tpu.memory_space<vmem>>) attributes {dimension_semantics = [#tpu.dimension_semantics<parallel>], iteration_bounds = array<i64: 1>, scalar_prefetch = 0 : i64, scratch_operands = 0 : i64, tpu.core_type = #tpu.core_type<tc>, window_params = [{transform_indices = @transform_0, window_bounds = array<i64: 2, 400>}, {pipeline_mode = #tpu.pipeline_mode<synchronous>, transform_indices = @transform_1, window_bounds = array<i64: 400, 120>}, {pipeline_mode = #tpu.pipeline_mode<synchronous>, transform_indices = @transform_2, window_bounds = array<i64: 1, 120>}, {pipeline_mode = #tpu.pipeline_mode<synchronous>, transform_indices = @transform_3, window_bounds = array<i64: 120, 84>}, {pipeline_mode = #tpu.pipeline_mode<synchronous>, transform_indices = @transform_4, window_bounds = array<i64: 1, 84>}, {pipeline_mode = #tpu.pipeline_mode<synchronous>, transform_indices = @transform_5, window_bounds = array<i64: 84, 10>}, {pipeline_mode = #tpu.pipeline_mode<synchronous>, transform_indices = @transform_6, window_bounds = array<i64: 1, 10>}, {transform_indices = @transform_7, window_bounds = array<i64: 2, 10>}]} {
    %c0 = arith.constant 0 : index
    %c0_0 = arith.constant 0 : index
    %0 = vector.load %arg1[%c0, %c0_0] : memref<2x400xf32, #tpu.memory_space<vmem>>, vector<2x400xf32>
    %c0_1 = arith.constant 0 : index
    %c0_2 = arith.constant 0 : index
    %1 = vector.load %arg2[%c0_1, %c0_2] : memref<400x120xf32, #tpu.memory_space<vmem>>, vector<400x120xf32>
    %cst = arith.constant dense<0.000000e+00> : vector<2x120xf32>
    %2 = tpu.matmul %0, %1, %cst {dimension_numbers = #tpu.dot_dimension_numbers<[1], [0], [0], [1], [0, 0, 1, 1], [], []>} : vector<2x400xf32>, vector<400x120xf32>, vector<2x120xf32> -> vector<2x120xf32>
    %c0_3 = arith.constant 0 : index
    %c0_4 = arith.constant 0 : index
    %3 = vector.load %arg3[%c0_3, %c0_4] : memref<1x120xf32, #tpu.memory_space<vmem>>, vector<1x120xf32>
    %4 = vector.broadcast %3 : vector<1x120xf32> to vector<2x120xf32>
    %5 = arith.addf %2, %4 : vector<2x120xf32>
    %cst_5 = arith.constant 0.000000e+00 : f32
    %6 = vector.broadcast %cst_5 : f32 to vector<2x120xf32>
    %7 = arith.subf %6, %5 : vector<2x120xf32>
    %8 = math.exp %7 : vector<2x120xf32>
    %cst_6 = arith.constant 1.000000e+00 : f32
    %9 = vector.broadcast %cst_6 : f32 to vector<2x120xf32>
    %10 = arith.addf %9, %8 : vector<2x120xf32>
    %11 = tpu.reciprocal %10 {approx = true} : vector<2x120xf32> -> vector<2x120xf32>
    %c0_7 = arith.constant 0 : index
    %c0_8 = arith.constant 0 : index
    %12 = vector.load %arg4[%c0_7, %c0_8] : memref<120x84xf32, #tpu.memory_space<vmem>>, vector<120x84xf32>
    %cst_9 = arith.constant dense<0.000000e+00> : vector<2x84xf32>
    %13 = tpu.matmul %11, %12, %cst_9 {dimension_numbers = #tpu.dot_dimension_numbers<[1], [0], [0], [1], [0, 0, 1, 1], [], []>} : vector<2x120xf32>, vector<120x84xf32>, vector<2x84xf32> -> vector<2x84xf32>
    %c0_10 = arith.constant 0 : index
    %c0_11 = arith.constant 0 : index
    %14 = vector.load %arg5[%c0_10, %c0_11] : memref<1x84xf32, #tpu.memory_space<vmem>>, vector<1x84xf32>
    %15 = vector.broadcast %14 : vector<1x84xf32> to vector<2x84xf32>
    %16 = arith.addf %13, %15 : vector<2x84xf32>
    %cst_12 = arith.constant 0.000000e+00 : f32
    %17 = vector.broadcast %cst_12 : f32 to vector<2x84xf32>
    %18 = arith.subf %17, %16 : vector<2x84xf32>
    %19 = math.exp %18 : vector<2x84xf32>
    %cst_13 = arith.constant 1.000000e+00 : f32
    %20 = vector.broadcast %cst_13 : f32 to vector<2x84xf32>
    %21 = arith.addf %20, %19 : vector<2x84xf32>
    %22 = tpu.reciprocal %21 {approx = true} : vector<2x84xf32> -> vector<2x84xf32>
    %c0_14 = arith.constant 0 : index
    %c0_15 = arith.constant 0 : index
    %23 = vector.load %arg6[%c0_14, %c0_15] : memref<84x10xf32, #tpu.memory_space<vmem>>, vector<84x10xf32>
    %cst_16 = arith.constant dense<0.000000e+00> : vector<2x10xf32>
    %24 = tpu.matmul %22, %23, %cst_16 {dimension_numbers = #tpu.dot_dimension_numbers<[1], [0], [0], [1], [0, 0, 1, 1], [], []>} : vector<2x84xf32>, vector<84x10xf32>, vector<2x10xf32> -> vector<2x10xf32>
    %c0_17 = arith.constant 0 : index
    %c0_18 = arith.constant 0 : index
    %25 = vector.load %arg7[%c0_17, %c0_18] : memref<1x10xf32, #tpu.memory_space<vmem>>, vector<1x10xf32>
    %26 = vector.broadcast %25 : vector<1x10xf32> to vector<2x10xf32>
    %27 = arith.addf %24, %26 : vector<2x10xf32>
    %cst_19 = arith.constant 0.000000e+00 : f32
    %28 = vector.broadcast %cst_19 : f32 to vector<2x10xf32>
    %29 = arith.subf %28, %27 : vector<2x10xf32>
    %30 = math.exp %29 : vector<2x10xf32>
    %cst_20 = arith.constant 1.000000e+00 : f32
    %31 = vector.broadcast %cst_20 : f32 to vector<2x10xf32>
    %32 = arith.addf %31, %30 : vector<2x10xf32>
    %33 = tpu.reciprocal %32 {approx = true} : vector<2x10xf32> -> vector<2x10xf32>
    %c0_21 = arith.constant 0 : index
    %c0_22 = arith.constant 0 : index
    %34 = vector.load %arg8[%c0_21, %c0_22] : memref<2x10xf32, #tpu.memory_space<vmem>>, vector<2x10xf32>
    tpu.vector_store %arg8[%c0_21, %c0_22], %33 {strides = array<i32>} : memref<2x10xf32, #tpu.memory_space<vmem>>, vector<2x10xf32>,
    return
  }
  func.func @transform_0(%arg0: i32) -> (i32, i32) {
    %c0_i32 = arith.constant 0 : i32
    %c0_i32_0 = arith.constant 0 : i32
    return %arg0, %c0_i32 : i32, i32
  }
  func.func @transform_1(%arg0: i32) -> (i32, i32) {
    %c0_i32 = arith.constant 0 : i32
    %c0_i32_0 = arith.constant 0 : i32
    %c0_i32_1 = arith.constant 0 : i32
    return %c0_i32, %c0_i32_0 : i32, i32
  }
  func.func @transform_2(%arg0: i32) -> (i32, i32) {
    %c0_i32 = arith.constant 0 : i32
    %c0_i32_0 = arith.constant 0 : i32
    %c0_i32_1 = arith.constant 0 : i32
    return %c0_i32, %c0_i32_0 : i32, i32
  }
  func.func @transform_3(%arg0: i32) -> (i32, i32) {
    %c0_i32 = arith.constant 0 : i32
    %c0_i32_0 = arith.constant 0 : i32
    %c0_i32_1 = arith.constant 0 : i32
    return %c0_i32, %c0_i32_0 : i32, i32
  }
  func.func @transform_4(%arg0: i32) -> (i32, i32) {
    %c0_i32 = arith.constant 0 : i32
    %c0_i32_0 = arith.constant 0 : i32
    %c0_i32_1 = arith.constant 0 : i32
    return %c0_i32, %c0_i32_0 : i32, i32
  }
  func.func @transform_5(%arg0: i32) -> (i32, i32) {
    %c0_i32 = arith.constant 0 : i32
    %c0_i32_0 = arith.constant 0 : i32
    %c0_i32_1 = arith.constant 0 : i32
    return %c0_i32, %c0_i32_0 : i32, i32
  }
  func.func @transform_6(%arg0: i32) -> (i32, i32) {
    %c0_i32 = arith.constant 0 : i32
    %c0_i32_0 = arith.constant 0 : i32
    %c0_i32_1 = arith.constant 0 : i32
    return %c0_i32, %c0_i32_0 : i32, i32
  }
  func.func @transform_7(%arg0: i32) -> (i32, i32) {
    %c0_i32 = arith.constant 0 : i32
    %c0_i32_0 = arith.constant 0 : i32
    return %arg0, %c0_i32 : i32, i32
  }
}

</mosaic_0001>

<llo_original>
// kernel: lenet_forward.3
$region0: #{lenet_forward.3}
  #allocation0 [shape = 'u32[]', space=smem, size = 0x4, offset = 0x4, fixed_abs, tag = 'smem constant byte address 0x4 - core index']
  #allocation1 [shape = 'u32[144,128]{1,0:T(1,128)}', space=vmem, size = 0x12000, scoped, tag = 'internal scratch']
  %s0 = inlined_call_operand.vmem [shape: f32[2,400], index: 0, kind: input, shape index: {}]
  %s1 = inlined_call_operand.vmem [shape: f32[400,120], index: 1, kind: input, shape index: {}]
  %s2 = inlined_call_operand.vmem [shape: f32[1,120], index: 2, kind: input, shape index: {}]
  %s3 = inlined_call_operand.vmem [shape: f32[120,84], index: 3, kind: input, shape index: {}]
  %s4 = inlined_call_operand.vmem [shape: f32[1,84], index: 4, kind: input, shape index: {}]
  %s5 = inlined_call_operand.vmem [shape: f32[84,10], index: 5, kind: input, shape index: {}]
  %s6 = inlined_call_operand.vmem [shape: f32[1,10], index: 6, kind: input, shape index: {}]
  %s7 = inlined_call_operand.hbm [shape: f32[2,10], index: 7, kind: output, shape index: {}]
  %s8 = sld [smem:[#allocation0]]
  $region38: #{lenet_forward.3} parent=0
    _
  %s10 = ssub.s32 1, %s8
  %s11 = scalar_select 0, %s10, %s8
  $region1: #{lenet_forward.3} parent=0
    #allocation2 [shape = 'u8[1024]{0}', space=vmem, size = 0x400, scoped, tag = 'output window, operand 0, single buffered']
    #allocation3 [shape = 's32[1]{0}', space=sflag, size = 0x4, scoped, tag = 'scoped memory for lenet_forward.3']
    %12 = vsyncpa [#allocation3], 0
    // Predicated region
    $region2: #{lenet_forward.3} parent=1 // pred_check
      _
    $region3: #{lenet_forward.3} parent=1 // pred_check_branch
      %14 = sbr.rel (0) target = $region5
    $region4: #{lenet_forward.3} parent=1 // pred_region
      _
    $region5: #{lenet_forward.3} parent=1 // pred_fallthru
      _
    // Predicated region
    $region6: #{lenet_forward.3} parent=1 // pred_check
      _
    $region7: #{lenet_forward.3} parent=1 // pred_check_branch
      %16 = sbr.rel (0) target = $region9
    $region8: #{lenet_forward.3} parent=1 // pred_region
      _
    $region9: #{lenet_forward.3} parent=1 // pred_fallthru
      _
    // Predicated region
    $region10: #{lenet_forward.3} parent=1 // pred_check
      _
    $region11: #{lenet_forward.3} parent=1 // pred_check_branch
      %18 = sbr.rel (0) target = $region13
    $region12: #{lenet_forward.3} parent=1 // pred_region
      _
    $region13: #{lenet_forward.3} parent=1 // pred_fallthru
      _
    // Predicated region
    $region14: #{lenet_forward.3} parent=1 // pred_check
      _
    $region15: #{lenet_forward.3} parent=1 // pred_check_branch
      %20 = sbr.rel (0) target = $region17
    $region16: #{lenet_forward.3} parent=1 // pred_region
      _
    $region17: #{lenet_forward.3} parent=1 // pred_fallthru
      _
    // Predicated region
    $region18: #{lenet_forward.3} parent=1 // pred_check
      _
    $region19: #{lenet_forward.3} parent=1 // pred_check_branch
      %22 = sbr.rel (0) target = $region21
    $region20: #{lenet_forward.3} parent=1 // pred_region
      _
    $region21: #{lenet_forward.3} parent=1 // pred_fallthru
      _
    // Predicated region
    $region22: #{lenet_forward.3} parent=1 // pred_check
      _
    $region23: #{lenet_forward.3} parent=1 // pred_check_branch
      %24 = sbr.rel (0) target = $region25
    $region24: #{lenet_forward.3} parent=1 // pred_region
      _
    $region25: #{lenet_forward.3} parent=1 // pred_fallthru
      _
    // Predicated region
    $region26: #{lenet_forward.3} parent=1 // pred_check
      _
    $region27: #{lenet_forward.3} parent=1 // pred_check_branch
      %26 = sbr.rel (0) target = $region29
    $region28: #{lenet_forward.3} parent=1 // pred_region
      _
    $region29: #{lenet_forward.3} parent=1 // pred_fallthru
      _
    %v27 = vld [vmem:[%s0] sm:$0xff]
    %v28 = vld [vmem:[%s1] sm:$0xff]
    %v29 = vld [vmem:[%s1 + $0x8] sm:$0xff]
    %v30 = vld [vmem:[%s1 + $0x10] sm:$0xff]
    %v31 = vld [vmem:[%s1 + $0x18] sm:$0xff]
    %v32 = vld [vmem:[%s1 + $0x20] sm:$0xff]
    %v33 = vld [vmem:[%s1 + $0x28] sm:$0xff]
    %v34 = vld [vmem:[%s1 + $0x30] sm:$0xff]
    %v35 = vld [vmem:[%s1 + $0x38] sm:$0xff]
    %v36 = vld [vmem:[%s1 + $0x40] sm:$0xff]
    %v37 = vld [vmem:[%s1 + $0x48] sm:$0xff]
    %v38 = vld [vmem:[%s1 + $0x50] sm:$0xff]
    %v39 = vld [vmem:[%s1 + $0x58] sm:$0xff]
    %v40 = vld [vmem:[%s1 + $0x60] sm:$0xff]
    %v41 = vld [vmem:[%s1 + $0x68] sm:$0xff]
    %v42 = vld [vmem:[%s1 + $0x70] sm:$0xff]
    %v43 = vld [vmem:[%s1 + $0x78] sm:$0xff]
    %v44 = vld [vmem:[%s1 + $0x80] sm:$0xff]
    %v45 = vld [vmem:[%s1 + $0x88] sm:$0xff]
    %v46 = vld [vmem:[%s1 + $0x90] sm:$0xff]
    %v47 = vld [vmem:[%s1 + $0x98] sm:$0xff]
    %v48 = vld [vmem:[%s1 + $0xa0] sm:$0xff]
    %v49 = vld [vmem:[%s1 + $0xa8] sm:$0xff]
    %v50 = vld [vmem:[%s1 + $0xb0] sm:$0xff]
    %v51 = vld [vmem:[%s1 + $0xb8] sm:$0xff]
    %v52 = vld [vmem:[%s1 + $0xc0] sm:$0xff]
    %v53 = vld [vmem:[%s1 + $0xc8] sm:$0xff]
    %v54 = vld [vmem:[%s1 + $0xd0] sm:$0xff]
    %v55 = vld [vmem:[%s1 + $0xd8] sm:$0xff]
    %v56 = vld [vmem:[%s1 + $0xe0] sm:$0xff]
    %v57 = vld [vmem:[%s1 + $0xe8] sm:$0xff]
    %v58 = vld [vmem:[%s1 + $0xf0] sm:$0xff]
    %v59 = vld [vmem:[%s1 + $0xf8] sm:$0xff]
    %v60 = vld [vmem:[%s1 + $0x100] sm:$0xff]
    %v61 = vld [vmem:[%s1 + $0x108] sm:$0xff]
    %v62 = vld [vmem:[%s1 + $0x110] sm:$0xff]
    %v63 = vld [vmem:[%s1 + $0x118] sm:$0xff]
    %v64 = vld [vmem:[%s1 + $0x120] sm:$0xff]
    %v65 = vld [vmem:[%s1 + $0x128] sm:$0xff]
    %v66 = vld [vmem:[%s1 + $0x130] sm:$0xff]
    %v67 = vld [vmem:[%s1 + $0x138] sm:$0xff]
    %v68 = vld [vmem:[%s1 + $0x140] sm:$0xff]
    %v69 = vld [vmem:[%s1 + $0x148] sm:$0xff]
    %v70 = vld [vmem:[%s1 + $0x150] sm:$0xff]
    %v71 = vld [vmem:[%s1 + $0x158] sm:$0xff]
    %v72 = vld [vmem:[%s1 + $0x160] sm:$0xff]
    %v73 = vld [vmem:[%s1 + $0x168] sm:$0xff]
    %v74 = vld [vmem:[%s1 + $0x170] sm:$0xff]
    %v75 = vld [vmem:[%s1 + $0x178] sm:$0xff]
    %v76 = vld [vmem:[%s1 + $0x180] sm:$0xff]
    %v77 = vld [vmem:[%s1 + $0x188] sm:$0xff]
    %v78 = vld [vmem:[%s2] sm:$0x1]
    %v80 = vlaneseq
    %v81 = vshrl.u32 %v80, 7
    %v82 = vsub.s32 0, %v81
    %v83 = vrot.slane %v78, %v82
    %v86 = vcombine.high %v27, %v27
    %v88 = vunpack.c.l.s4 1983009808
    %v89 = vunpack.c.0.s8 %v88
    %v90 = vlaneseq
    %v91 = vshrl.u32 %v90, 7
    %v92 = vsub.s32 %v89, %v91
    %v93 = vrot.slane %v27, %v92
    %v95 = vunpack.c.l.s4 1983009808
    %v96 = vunpack.c.0.s8 %v95
    %v97 = vlaneseq
    %v98 = vshrl.u32 %v97, 7
    %v99 = vsub.s32 %v96, %v98
    %v100 = vrot.slane %v86, %v99
    %v101 = vcombine.high %v93, %v93
    %v102 = vcombine.high %v100, %v100
    %vm106 = vcmask 130048
    %v107 = vsel %vm106, %v102, 0
    %109 = vmatprep.subr.mxu0 0.0
    %110 = vmatpush1.msra.mxu0 %v43
    %111 = vmatprep.subr.mxu0 0.0
    %112 = vmatpush1.msra.mxu0 %v42
    %113 = vmatprep.subr.mxu0 0.0
    %114 = vmatpush1.msra.mxu0 %v41
    %115 = vmatprep.subr.mxu0 0.0
    %116 = vmatpush1.msra.mxu0 %v40
    %117 = vmatprep.subr.mxu0 0.0
    %118 = vmatpush1.msra.mxu0 %v39
    %119 = vmatprep.subr.mxu0 0.0
    %120 = vmatpush1.msra.mxu0 %v38
    %121 = vmatprep.subr.mxu0 0.0
    %122 = vmatpush1.msra.mxu0 %v37
    %123 = vmatprep.subr.mxu0 0.0
    %124 = vmatpush1.msra.mxu0 %v36
    %125 = vmatprep.subr.mxu0 0.0
    %126 = vmatpush1.msra.mxu0 %v35
    %127 = vmatprep.subr.mxu0 0.0
    %128 = vmatpush1.msra.mxu0 %v34
    %129 = vmatprep.subr.mxu0 0.0
    %130 = vmatpush1.msra.mxu0 %v33
    %131 = vmatprep.subr.mxu0 0.0
    %132 = vmatpush1.msra.mxu0 %v32
    %133 = vmatprep.subr.mxu0 0.0
    %134 = vmatpush1.msra.mxu0 %v31
    %135 = vmatprep.subr.mxu0 0.0
    %136 = vmatpush1.msra.mxu0 %v30
    %137 = vmatprep.subr.mxu0 0.0
    %138 = vmatpush1.msra.mxu0 %v29
    %139 = vmatprep.subr.mxu0 0.0
    %140 = vmatpush1.msra.mxu0 %v28
    %141 = vmatprep.subr.mxu0 0.0
    %142 = vmatpush2.msra.mxu0 %v59
    %143 = vmatprep.subr.mxu0 0.0
    %144 = vmatpush2.msra.mxu0 %v58
    %145 = vmatprep.subr.mxu0 0.0
    %146 = vmatpush2.msra.mxu0 %v57
    %147 = vmatprep.subr.mxu0 0.0
    %148 = vmatpush2.msra.mxu0 %v56
    %149 = vmatprep.subr.mxu0 0.0
    %150 = vmatpush2.msra.mxu0 %v55
    %151 = vmatprep.subr.mxu0 0.0
    %152 = vmatpush2.msra.mxu0 %v54
    %153 = vmatprep.subr.mxu0 0.0
    %154 = vmatpush2.msra.mxu0 %v53
    %155 = vmatprep.subr.mxu0 0.0
    %156 = vmatpush2.msra.mxu0 %v52
    %157 = vmatprep.subr.mxu0 0.0
    %158 = vmatpush2.msra.mxu0 %v51
    %159 = vmatprep.subr.mxu0 0.0
    %160 = vmatpush2.msra.mxu0 %v50
    %161 = vmatprep.subr.mxu0 0.0
    %162 = vmatpush2.msra.mxu0 %v49
    %163 = vmatprep.subr.mxu0 0.0
    %164 = vmatpush2.msra.mxu0 %v48
    %165 = vmatprep.subr.mxu0 0.0
    %166 = vmatpush2.msra.mxu0 %v47
    %167 = vmatprep.subr.mxu0 0.0
    %168 = vmatpush2.msra.mxu0 %v46
    %169 = vmatprep.subr.mxu0 0.0
    %170 = vmatpush2.msra.mxu0 %v45
    %171 = vmatprep.subr.mxu0 0.0
    %172 = vmatpush2.msra.mxu0 %v44
    %173 = vmatprep.mubr.f32.mxu0 %v101
    %174 = vmatmul.mubr.f32.gmra.mxu0 %v93
    %v175 = vpop.f32.mrf.mxu0
    %v176 = vadd.f32 %v83, %v175
    %v177 = vpop.f32.mrf.mxu0
    %178 = vdwg.mxu0
    %179 = vmatprep.subr.mxu0 0.0
    %180 = vmatpush1.msra.mxu0 %v75
    %181 = vmatprep.subr.mxu0 0.0
    %182 = vmatpush1.msra.mxu0 %v74
    %183 = vmatprep.subr.mxu0 0.0
    %184 = vmatpush1.msra.mxu0 %v73
    %185 = vmatprep.subr.mxu0 0.0
    %186 = vmatpush1.msra.mxu0 %v72
    %187 = vmatprep.subr.mxu0 0.0
    %188 = vmatpush1.msra.mxu0 %v71
    %189 = vmatprep.subr.mxu0 0.0
    %190 = vmatpush1.msra.mxu0 %v70
    %191 = vmatprep.subr.mxu0 0.0
    %192 = vmatpush1.msra.mxu0 %v69
    %193 = vmatprep.subr.mxu0 0.0
    %194 = vmatpush1.msra.mxu0 %v68
    %195 = vmatprep.subr.mxu0 0.0
    %196 = vmatpush1.msra.mxu0 %v67
    %197 = vmatprep.subr.mxu0 0.0
    %198 = vmatpush1.msra.mxu0 %v66
    %199 = vmatprep.subr.mxu0 0.0
    %200 = vmatpush1.msra.mxu0 %v65
    %201 = vmatprep.subr.mxu0 0.0
    %202 = vmatpush1.msra.mxu0 %v64
    %203 = vmatprep.subr.mxu0 0.0
    %204 = vmatpush1.msra.mxu0 %v63
    %205 = vmatprep.subr.mxu0 0.0
    %206 = vmatpush1.msra.mxu0 %v62
    %207 = vmatprep.subr.mxu0 0.0
    %208 = vmatpush1.msra.mxu0 %v61
    %209 = vmatprep.subr.mxu0 0.0
    %210 = vmatpush1.msra.mxu0 %v60
    %211 = vmatprep.subr.mxu0 0.0
    %212 = vmatpush2.msra.mxu0 0.0
    %213 = vmatprep.subr.mxu0 0.0
    %214 = vmatpush2.msra.mxu0 0.0
    %215 = vmatprep.subr.mxu0 0.0
    %216 = vmatpush2.msra.mxu0 0.0
    %217 = vmatprep.subr.mxu0 0.0
    %218 = vmatpush2.msra.mxu0 0.0
    %219 = vmatprep.subr.mxu0 0.0
    %220 = vmatpush2.msra.mxu0 0.0
    %221 = vmatprep.subr.mxu0 0.0
    %222 = vmatpush2.msra.mxu0 0.0
    %223 = vmatprep.subr.mxu0 0.0
    %224 = vmatpush2.msra.mxu0 0.0
    %225 = vmatprep.subr.mxu0 0.0
    %226 = vmatpush2.msra.mxu0 0.0
    %227 = vmatprep.subr.mxu0 0.0
    %228 = vmatpush2.msra.mxu0 0.0
    %229 = vmatprep.subr.mxu0 0.0
    %230 = vmatpush2.msra.mxu0 0.0
    %231 = vmatprep.subr.mxu0 0.0
    %232 = vmatpush2.msra.mxu0 0.0
    %233 = vmatprep.subr.mxu0 0.0
    %234 = vmatpush2.msra.mxu0 0.0
    %235 = vmatprep.subr.mxu0 0.0
    %236 = vmatpush2.msra.mxu0 0.0
    %237 = vmatprep.subr.mxu0 0.0
    %238 = vmatpush2.msra.mxu0 0.0
    %239 = vmatprep.subr.mxu0 0.0
    %240 = vmatpush2.msra.mxu0 %v77
    %241 = vmatprep.subr.mxu0 0.0
    %242 = vmatpush2.msra.mxu0 %v76
    %243 = vmatprep.mubr.f32.mxu0 %v107
    %244 = vmatmul.mubr.f32.gmra.mxu0 %v100
    %v245 = vpop.f32.mrf.mxu0
    %v246 = vadd.f32 %v176, %v245
    %v247 = vpop.f32.mrf.mxu0
    %248 = vdwg.mxu0
    %v249 = vsub.f32 0.0, %v246
    %v250 = vmul.f32 %v249, 1.442695
    %v251 = vpow.pop %v250
    %v252 = vadd.f32 %v251, 1.0
    %v253 = vrcp.pop %v252
    %v254 = vld [vmem:[%s3] sm:$0xff]
    %v255 = vld [vmem:[%s3 + $0x8] sm:$0xff]
    %v256 = vld [vmem:[%s3 + $0x10] sm:$0xff]
    %v257 = vld [vmem:[%s3 + $0x18] sm:$0xff]
    %v258 = vld [vmem:[%s3 + $0x20] sm:$0xff]
    %v259 = vld [vmem:[%s3 + $0x28] sm:$0xff]
    %v260 = vld [vmem:[%s3 + $0x30] sm:$0xff]
    %v261 = vld [vmem:[%s3 + $0x38] sm:$0xff]
    %v262 = vld [vmem:[%s3 + $0x40] sm:$0xff]
    %v263 = vld [vmem:[%s3 + $0x48] sm:$0xff]
    %v264 = vld [vmem:[%s3 + $0x50] sm:$0xff]
    %v265 = vld [vmem:[%s3 + $0x58] sm:$0xff]
    %v266 = vld [vmem:[%s3 + $0x60] sm:$0xff]
    %v267 = vld [vmem:[%s3 + $0x68] sm:$0xff]
    %v268 = vld [vmem:[%s3 + $0x70] sm:$0xff]
    %v269 = vld [vmem:[%s4] sm:$0x1]
    %v271 = vlaneseq
    %v272 = vshrl.u32 %v271, 7
    %v273 = vsub.s32 0, %v272
    %v274 = vrot.slane %v269, %v273
    %vm276 = vcmask 982016
    %v278 = vsel %vm276, %v253, 0
    %280 = vmatprep.subr.mxu0 0.0
    %281 = vmatpush1.msra.mxu0 0.0
    %282 = vmatprep.subr.mxu0 0.0
    %283 = vmatpush1.msra.mxu0 %v268
    %284 = vmatprep.subr.mxu0 0.0
    %285 = vmatpush1.msra.mxu0 %v267
    %286 = vmatprep.subr.mxu0 0.0
    %287 = vmatpush1.msra.mxu0 %v266
    %288 = vmatprep.subr.mxu0 0.0
    %289 = vmatpush1.msra.mxu0 %v265
    %290 = vmatprep.subr.mxu0 0.0
    %291 = vmatpush1.msra.mxu0 %v264
    %292 = vmatprep.subr.mxu0 0.0
    %293 = vmatpush1.msra.mxu0 %v263
    %294 = vmatprep.subr.mxu0 0.0
    %295 = vmatpush1.msra.mxu0 %v262
    %296 = vmatprep.subr.mxu0 0.0
    %297 = vmatpush1.msra.mxu0 %v261
    %298 = vmatprep.subr.mxu0 0.0
    %299 = vmatpush1.msra.mxu0 %v260
    %300 = vmatprep.subr.mxu0 0.0
    %301 = vmatpush1.msra.mxu0 %v259
    %302 = vmatprep.subr.mxu0 0.0
    %303 = vmatpush1.msra.mxu0 %v258
    %304 = vmatprep.subr.mxu0 0.0
    %305 = vmatpush1.msra.mxu0 %v257
    %306 = vmatprep.subr.mxu0 0.0
    %307 = vmatpush1.msra.mxu0 %v256
    %308 = vmatprep.subr.mxu0 0.0
    %309 = vmatpush1.msra.mxu0 %v255
    %310 = vmatprep.subr.mxu0 0.0
    %311 = vmatpush1.msra.mxu0 %v254
    %312 = vmatprep.subr.mxu0 0.0
    %313 = vmatpush2.msra.mxu0 0.0
    %314 = vmatprep.subr.mxu0 0.0
    %315 = vmatpush2.msra.mxu0 0.0
    %316 = vmatprep.subr.mxu0 0.0
    %317 = vmatpush2.msra.mxu0 0.0
    %318 = vmatprep.subr.mxu0 0.0
    %319 = vmatpush2.msra.mxu0 0.0
    %320 = vmatprep.subr.mxu0 0.0
    %321 = vmatpush2.msra.mxu0 0.0
    %322 = vmatprep.subr.mxu0 0.0
    %323 = vmatpush2.msra.mxu0 0.0
    %324 = vmatprep.subr.mxu0 0.0
    %325 = vmatpush2.msra.mxu0 0.0
    %326 = vmatprep.subr.mxu0 0.0
    %327 = vmatpush2.msra.mxu0 0.0
    %328 = vmatprep.subr.mxu0 0.0
    %329 = vmatpush2.msra.mxu0 0.0
    %330 = vmatprep.subr.mxu0 0.0
    %331 = vmatpush2.msra.mxu0 0.0
    %332 = vmatprep.subr.mxu0 0.0
    %333 = vmatpush2.msra.mxu0 0.0
    %334 = vmatprep.subr.mxu0 0.0
    %335 = vmatpush2.msra.mxu0 0.0
    %336 = vmatprep.subr.mxu0 0.0
    %337 = vmatpush2.msra.mxu0 0.0
    %338 = vmatprep.subr.mxu0 0.0
    %339 = vmatpush2.msra.mxu0 0.0
    %340 = vmatprep.subr.mxu0 0.0
    %341 = vmatpush2.msra.mxu0 0.0
    %342 = vmatprep.subr.mxu0 0.0
    %343 = vmatpush2.msra.mxu0 0.0
    %344 = vmatprep.mubr.f32.mxu0 0.0
    %345 = vmatmul.mubr.f32.gmra.mxu0 %v278
    %v346 = vpop.f32.mrf.mxu0
    %v347 = vadd.f32 %v274, %v346
    %v348 = vpop.f32.mrf.mxu0
    %349 = vdwg.mxu0
    %v350 = vsub.f32 0.0, %v347
    %v351 = vmul.f32 %v350, 1.442695
    %v352 = vpow.pop %v351
    %v353 = vadd.f32 %v352, 1.0
    %v354 = vrcp.pop %v353
    %v355 = vld [vmem:[%s5] sm:$0xff]
    %v356 = vld [vmem:[%s5 + $0x8] sm:$0xff]
    %v357 = vld [vmem:[%s5 + $0x10] sm:$0xff]
    %v358 = vld [vmem:[%s5 + $0x18] sm:$0xff]
    %v359 = vld [vmem:[%s5 + $0x20] sm:$0xff]
    %v360 = vld [vmem:[%s5 + $0x28] sm:$0xff]
    %v361 = vld [vmem:[%s5 + $0x30] sm:$0xff]
    %v362 = vld [vmem:[%s5 + $0x38] sm:$0xff]
    %v363 = vld [vmem:[%s5 + $0x40] sm:$0xff]
    %v364 = vld [vmem:[%s5 + $0x48] sm:$0xff]
    %v365 = vld [vmem:[%s5 + $0x50] sm:$0xf]
    %v366 = vld [vmem:[%s6] sm:$0x1]
    %v368 = vlaneseq
    %v369 = vshrl.u32 %v368, 7
    %v370 = vsub.s32 0, %v369
    %v371 = vrot.slane %v366, %v370
    %vm373 = vcmask 687104
    %v375 = vsel %vm373, %v354, 0
    %vm377 = vcmask 1043456
    %v379 = vsel %vm377, %v365, 0
    %381 = vmatprep.subr.mxu0 0.0
    %382 = vmatpush1.msra.mxu0 0.0
    %383 = vmatprep.subr.mxu0 0.0
    %384 = vmatpush1.msra.mxu0 0.0
    %385 = vmatprep.subr.mxu0 0.0
    %386 = vmatpush1.msra.mxu0 0.0
    %387 = vmatprep.subr.mxu0 0.0
    %388 = vmatpush1.msra.mxu0 0.0
    %389 = vmatprep.subr.mxu0 0.0
    %390 = vmatpush1.msra.mxu0 0.0
    %391 = vmatprep.subr.mxu0 0.0
    %392 = vmatpush1.msra.mxu0 %v379
    %393 = vmatprep.subr.mxu0 0.0
    %394 = vmatpush1.msra.mxu0 %v364
    %395 = vmatprep.subr.mxu0 0.0
    %396 = vmatpush1.msra.mxu0 %v363
    %397 = vmatprep.subr.mxu0 0.0
    %398 = vmatpush1.msra.mxu0 %v362
    %399 = vmatprep.subr.mxu0 0.0
    %400 = vmatpush1.msra.mxu0 %v361
    %401 = vmatprep.subr.mxu0 0.0
    %402 = vmatpush1.msra.mxu0 %v360
    %403 = vmatprep.subr.mxu0 0.0
    %404 = vmatpush1.msra.mxu0 %v359
    %405 = vmatprep.subr.mxu0 0.0
    %406 = vmatpush1.msra.mxu0 %v358
    %407 = vmatprep.subr.mxu0 0.0
    %408 = vmatpush1.msra.mxu0 %v357
    %409 = vmatprep.subr.mxu0 0.0
    %410 = vmatpush1.msra.mxu0 %v356
    %411 = vmatprep.subr.mxu0 0.0
    %412 = vmatpush1.msra.mxu0 %v355
    %413 = vmatprep.subr.mxu0 0.0
    %414 = vmatpush2.msra.mxu0 0.0
    %415 = vmatprep.subr.mxu0 0.0
    %416 = vmatpush2.msra.mxu0 0.0
    %417 = vmatprep.subr.mxu0 0.0
    %418 = vmatpush2.msra.mxu0 0.0
    %419 = vmatprep.subr.mxu0 0.0
    %420 = vmatpush2.msra.mxu0 0.0
    %421 = vmatprep.subr.mxu0 0.0
    %422 = vmatpush2.msra.mxu0 0.0
    %423 = vmatprep.subr.mxu0 0.0
    %424 = vmatpush2.msra.mxu0 0.0
    %425 = vmatprep.subr.mxu0 0.0
    %426 = vmatpush2.msra.mxu0 0.0
    %427 = vmatprep.subr.mxu0 0.0
    %428 = vmatpush2.msra.mxu0 0.0
    %429 = vmatprep.subr.mxu0 0.0
    %430 = vmatpush2.msra.mxu0 0.0
    %431 = vmatprep.subr.mxu0 0.0
    %432 = vmatpush2.msra.mxu0 0.0
    %433 = vmatprep.subr.mxu0 0.0
    %434 = vmatpush2.msra.mxu0 0.0
    %435 = vmatprep.subr.mxu0 0.0
    %436 = vmatpush2.msra.mxu0 0.0
    %437 = vmatprep.subr.mxu0 0.0
    %438 = vmatpush2.msra.mxu0 0.0
    %439 = vmatprep.subr.mxu0 0.0
    %440 = vmatpush2.msra.mxu0 0.0
    %441 = vmatprep.subr.mxu0 0.0
    %442 = vmatpush2.msra.mxu0 0.0
    %443 = vmatprep.subr.mxu0 0.0
    %444 = vmatpush2.msra.mxu0 0.0
    %445 = vmatprep.mubr.f32.mxu0 0.0
    %446 = vmatmul.mubr.f32.gmra.mxu0 %v375
    %v447 = vpop.f32.mrf.mxu0
    %v448 = vadd.f32 %v371, %v447
    %v449 = vpop.f32.mrf.mxu0
    %450 = vdwg.mxu0
    %v451 = vsub.f32 0.0, %v448
    %v452 = vmul.f32 %v451, 1.442695
    %v453 = vpow.pop %v452
    %v454 = vadd.f32 %v453, 1.0
    %v455 = vrcp.pop %v454
    %vm456 = vcmask 74752
    %457 = vst.msk [vmem:[#allocation2] sm:$0x3] %vm456, %v455
    // Predicated region
    $region30: #{lenet_forward.3} parent=1 // pred_check
      _
    $region31: #{lenet_forward.3} parent=1 // pred_check_branch
      %459 = sbr.rel (0) target = $region33
    $region32: #{lenet_forward.3} parent=1 // pred_region
      %s461 = ssub.s32 32, 32
      %462 = vsyncadd [#allocation3], %s461
      %s464 = sshll.u32 [#allocation2], 4
      %s465 = int_to_ptr.vmem [resolvable:$true] %s464
      %467 = dma.vmem_to_hbm [thread:$0]  %s465, 32, %s7, [#allocation3]
    $region33: #{lenet_forward.3} parent=1 // pred_fallthru
      _
    // Predicated region
    $region34: #{lenet_forward.3} parent=1 // pred_check
      _
    $region35: #{lenet_forward.3} parent=1 // pred_check_branch
      %469 = sbr.rel (0) target = $region37
    $region36: #{lenet_forward.3} parent=1 // pred_region
      %470 = dma.done [#allocation3], 32
    $region37: #{lenet_forward.3} parent=1 // pred_fallthru
      _
    %471 = vsyncpa [#allocation3], 1

// kernel: lenet_forward.2
$region0: #{lenet_forward.2}
  #allocation0 [shape = 'u32[]', space=smem, size = 0x4, offset = 0x4, fixed_abs, tag = 'smem constant byte address 0x4 - core index']
  #allocation1 [shape = 'u32[144,128]{1,0:T(1,128)}', space=vmem, size = 0x12000, scoped, tag = 'internal scratch']
  %s0 = inlined_call_operand.vmem [shape: f32[2,32,32], index: 0, kind: input, shape index: {}]
  %s1 = inlined_call_operand.vmem [shape: f32[5,32,168], index: 1, kind: input, shape index: {}]
  %s2 = inlined_call_operand.vmem [shape: f32[1,168], index: 2, kind: input, shape index: {}]
  %s3 = inlined_call_operand.vmem [shape: f32[14,28], index: 3, kind: input, shape index: {}]
  %s4 = inlined_call_operand.vmem [shape: f32[168,84], index: 4, kind: input, shape index: {}]
  %s5 = inlined_call_operand.vmem [shape: f32[5,84,160], index: 5, kind: input, shape index: {}]
  %s6 = inlined_call_operand.vmem [shape: f32[1,160], index: 6, kind: input, shape index: {}]
  %s7 = inlined_call_operand.vmem [shape: f32[5,10], index: 7, kind: input, shape index: {}]
  %s8 = inlined_call_operand.vmem [shape: f32[160,80], index: 8, kind: input, shape index: {}]
  %s9 = inlined_call_operand.vmem [shape: f32[2,5,80], index: 9, kind: output, shape index: {}]
  %s10 = sld [smem:[#allocation0]]
  $region69: #{lenet_forward.2} parent=0
    _
  %s12 = ssub.s32 1, %s10
  %s13 = scalar_select 0, %s12, %s10
  loop: start=0, step=1, limit=4
  $region2: #{lenet_forward.2} parent=0 // loop_pre_header
    _
  $region3: #{lenet_forward.2} parent=0 // loop_header
    %s15 = sphi 0, %s19
    %p16 = scmp.ge.s32.totalorder %s15, 4
    %s25 = sphi 0, %s27
    %s28 = sphi 0, %s25
    %s29 = sphi 0, %s28
    %s45 = sphi 0, %s29
    %s49 = sphi 0, %s49
    %s51 = sphi 0, %s49
    %s52 = sphi 0, %s51
    %s66 = sphi 0, %s52
    %s70 = sphi 0, %s70
    %s72 = sphi 0, %s70
    %s73 = sphi 0, %s72
    %s87 = sphi 0, %s73
    %s91 = sphi 0, %s91
    %s93 = sphi 0, %s91
    %s94 = sphi 0, %s93
    %s108 = sphi 0, %s94
    %s112 = sphi 0, %s112
    %s114 = sphi 0, %s112
    %s115 = sphi 0, %s114
    %s129 = sphi 0, %s115
    %s133 = sphi 0, %s133
    %s135 = sphi 0, %s133
    %s136 = sphi 0, %s135
    %s150 = sphi 0, %s136
    %s154 = sphi 0, %s154
    %s156 = sphi 0, %s154
    %s157 = sphi 0, %s156
    %s171 = sphi 0, %s157
    %s175 = sphi 0, %s175
    %s177 = sphi 0, %s175
    %s178 = sphi 0, %s177
    %s192 = sphi 0, %s178
    %s196 = sphi 0, %s196
    %s198 = sphi 0, %s196
    %s199 = sphi 0, %s198
    %s213 = sphi 0, %s199
    %s219 = sphi 0, %s221
    %s222 = sphi 0, %s219
    %s223 = sphi 0, %s222
    %s239 = sphi 0, %s223
  $region4: #{lenet_forward.2} parent=0 // loop_header_branch
    %18 = sbr.rel (%p16) target = $region8
  $region5: #{lenet_forward.2} parent=0 // loop_body
    %s20 = ssub.s32 %s15, 1
    %s21 = ssub.s32 %s15, 2
    %s22 = sadd.s32 %s15, 1
    %s23 = ssub.s32 %s15, %s22
    %p24 = scmp.eq.s32.totalorder %s23, 0
    %s26 = sadd.s32 %s25, 1
    %s27 = scalar_select %p24, %s25, %s26
    %p30 = pneg %p24
    %p31 = scmp.eq.s32.totalorder %s15, 1
    %p32 = por %p30, %p31
    %p33 = scmp.ne.s32.totalorder %s25, %s28
    %p34 = scmp.eq.s32.totalorder %s15, 0
    %p35 = por %p33, %p34
    %p36 = scmp.ne.s32.totalorder %s25, %s28
    %p37 = scmp.eq.s32.totalorder %s20, 1
    %p38 = por %p36, %p37
    %p39 = scmp.ne.s32.totalorder %s28, %s29
    %p40 = scmp.eq.s32.totalorder %s20, 0
    %p41 = por %p39, %p40
    %p42 = scmp.ne.s32.totalorder %s28, %s29
    %p43 = scmp.eq.s32.totalorder %s21, 1
    %p44 = por %p42, %p43
    %p46 = scmp.ne.s32.totalorder %s29, %s45
    %p47 = scmp.eq.s32.totalorder %s21, 0
    %p48 = por %p46, %p47
    %s50 = sadd.s32 %s49, 1
    %p53 = scmp.eq.s32.totalorder %s15, 1
    %p54 = scmp.ne.s32.totalorder %s49, %s51
    %p55 = scmp.eq.s32.totalorder %s15, 0
    %p56 = por %p54, %p55
    %p57 = scmp.ne.s32.totalorder %s49, %s51
    %p58 = scmp.eq.s32.totalorder %s20, 1
    %p59 = por %p57, %p58
    %p60 = scmp.ne.s32.totalorder %s51, %s52
    %p61 = scmp.eq.s32.totalorder %s20, 0
    %p62 = por %p60, %p61
    %p63 = scmp.ne.s32.totalorder %s51, %s52
    %p64 = scmp.eq.s32.totalorder %s21, 1
    %p65 = por %p63, %p64
    %p67 = scmp.ne.s32.totalorder %s52, %s66
    %p68 = scmp.eq.s32.totalorder %s21, 0
    %p69 = por %p67, %p68
    %s71 = sadd.s32 %s70, 1
    %p74 = scmp.eq.s32.totalorder %s15, 1
    %p75 = scmp.ne.s32.totalorder %s70, %s72
    %p76 = scmp.eq.s32.totalorder %s15, 0
    %p77 = por %p75, %p76
    %p78 = scmp.ne.s32.totalorder %s70, %s72
    %p79 = scmp.eq.s32.totalorder %s20, 1
    %p80 = por %p78, %p79
    %p81 = scmp.ne.s32.totalorder %s72, %s73
    %p82 = scmp.eq.s32.totalorder %s20, 0
    %p83 = por %p81, %p82
    %p84 = scmp.ne.s32.totalorder %s72, %s73
    %p85 = scmp.eq.s32.totalorder %s21, 1
    %p86 = por %p84, %p85
    %p88 = scmp.ne.s32.totalorder %s73, %s87
    %p89 = scmp.eq.s32.totalorder %s21, 0
    %p90 = por %p88, %p89
    %s92 = sadd.s32 %s91, 1
    %p95 = scmp.eq.s32.totalorder %s15, 1
    %p96 = scmp.ne.s32.totalorder %s91, %s93
    %p97 = scmp.eq.s32.totalorder %s15, 0
    %p98 = por %p96, %p97
    %p99 = scmp.ne.s32.totalorder %s91, %s93
    %p100 = scmp.eq.s32.totalorder %s20, 1
    %p101 = por %p99, %p100
    %p102 = scmp.ne.s32.totalorder %s93, %s94
    %p103 = scmp.eq.s32.totalorder %s20, 0
    %p104 = por %p102, %p103
    %p105 = scmp.ne.s32.totalorder %s93, %s94
    %p106 = scmp.eq.s32.totalorder %s21, 1
    %p107 = por %p105, %p106
    %p109 = scmp.ne.s32.totalorder %s94, %s108
    %p110 = scmp.eq.s32.totalorder %s21, 0
    %p111 = por %p109, %p110
    %s113 = sadd.s32 %s112, 1
    %p116 = scmp.eq.s32.totalorder %s15, 1
    %p117 = scmp.ne.s32.totalorder %s112, %s114
    %p118 = scmp.eq.s32.totalorder %s15, 0
    %p119 = por %p117, %p118
    %p120 = scmp.ne.s32.totalorder %s112, %s114
    %p121 = scmp.eq.s32.totalorder %s20, 1
    %p122 = por %p120, %p121
    %p123 = scmp.ne.s32.totalorder %s114, %s115
    %p124 = scmp.eq.s32.totalorder %s20, 0
    %p125 = por %p123, %p124
    %p126 = scmp.ne.s32.totalorder %s114, %s115
    %p127 = scmp.eq.s32.totalorder %s21, 1
    %p128 = por %p126, %p127
    %p130 = scmp.ne.s32.totalorder %s115, %s129
    %p131 = scmp.eq.s32.totalorder %s21, 0
    %p132 = por %p130, %p131
    %s134 = sadd.s32 %s133, 1
    %p137 = scmp.eq.s32.totalorder %s15, 1
    %p138 = scmp.ne.s32.totalorder %s133, %s135
    %p139 = scmp.eq.s32.totalorder %s15, 0
    %p140 = por %p138, %p139
    %p141 = scmp.ne.s32.totalorder %s133, %s135
    %p142 = scmp.eq.s32.totalorder %s20, 1
    %p143 = por %p141, %p142
    %p144 = scmp.ne.s32.totalorder %s135, %s136
    %p145 = scmp.eq.s32.totalorder %s20, 0
    %p146 = por %p144, %p145
    %p147 = scmp.ne.s32.totalorder %s135, %s136
    %p148 = scmp.eq.s32.totalorder %s21, 1
    %p149 = por %p147, %p148
    %p151 = scmp.ne.s32.totalorder %s136, %s150
    %p152 = scmp.eq.s32.totalorder %s21, 0
    %p153 = por %p151, %p152
    %s155 = sadd.s32 %s154, 1
    %p158 = scmp.eq.s32.totalorder %s15, 1
    %p159 = scmp.ne.s32.totalorder %s154, %s156
    %p160 = scmp.eq.s32.totalorder %s15, 0
    %p161 = por %p159, %p160
    %p162 = scmp.ne.s32.totalorder %s154, %s156
    %p163 = scmp.eq.s32.totalorder %s20, 1
    %p164 = por %p162, %p163
    %p165 = scmp.ne.s32.totalorder %s156, %s157
    %p166 = scmp.eq.s32.totalorder %s20, 0
    %p167 = por %p165, %p166
    %p168 = scmp.ne.s32.totalorder %s156, %s157
    %p169 = scmp.eq.s32.totalorder %s21, 1
    %p170 = por %p168, %p169
    %p172 = scmp.ne.s32.totalorder %s157, %s171
    %p173 = scmp.eq.s32.totalorder %s21, 0
    %p174 = por %p172, %p173
    %s176 = sadd.s32 %s175, 1
    %p179 = scmp.eq.s32.totalorder %s15, 1
    %p180 = scmp.ne.s32.totalorder %s175, %s177
    %p181 = scmp.eq.s32.totalorder %s15, 0
    %p182 = por %p180, %p181
    %p183 = scmp.ne.s32.totalorder %s175, %s177
    %p184 = scmp.eq.s32.totalorder %s20, 1
    %p185 = por %p183, %p184
    %p186 = scmp.ne.s32.totalorder %s177, %s178
    %p187 = scmp.eq.s32.totalorder %s20, 0
    %p188 = por %p186, %p187
    %p189 = scmp.ne.s32.totalorder %s177, %s178
    %p190 = scmp.eq.s32.totalorder %s21, 1
    %p191 = por %p189, %p190
    %p193 = scmp.ne.s32.totalorder %s178, %s192
    %p194 = scmp.eq.s32.totalorder %s21, 0
    %p195 = por %p193, %p194
    %s197 = sadd.s32 %s196, 1
    %p200 = scmp.eq.s32.totalorder %s15, 1
    %p201 = scmp.ne.s32.totalorder %s196, %s198
    %p202 = scmp.eq.s32.totalorder %s15, 0
    %p203 = por %p201, %p202
    %p204 = scmp.ne.s32.totalorder %s196, %s198
    %p205 = scmp.eq.s32.totalorder %s20, 1
    %p206 = por %p204, %p205
    %p207 = scmp.ne.s32.totalorder %s198, %s199
    %p208 = scmp.eq.s32.totalorder %s20, 0
    %p209 = por %p207, %p208
    %p210 = scmp.ne.s32.totalorder %s198, %s199
    %p211 = scmp.eq.s32.totalorder %s21, 1
    %p212 = por %p210, %p211
    %p214 = scmp.ne.s32.totalorder %s199, %s213
    %p215 = scmp.eq.s32.totalorder %s21, 0
    %p216 = por %p214, %p215
    %s217 = ssub.s32 %s15, %s22
    %p218 = scmp.eq.s32.totalorder %s217, 0
    %s220 = sadd.s32 %s219, 1
    %s221 = scalar_select %p218, %s219, %s220
    %p224 = pneg %p218
    %p225 = scmp.eq.s32.totalorder %s15, 1
    %p226 = por %p224, %p225
    %p227 = scmp.ne.s32.totalorder %s219, %s222
    %p228 = scmp.eq.s32.totalorder %s15, 0
    %p229 = por %p227, %p228
    %p230 = scmp.ne.s32.totalorder %s219, %s222
    %p231 = scmp.eq.s32.totalorder %s20, 1
    %p232 = por %p230, %p231
    %p233 = scmp.ne.s32.totalorder %s222, %s223
    %p234 = scmp.eq.s32.totalorder %s20, 0
    %p235 = por %p233, %p234
    %p236 = scmp.ne.s32.totalorder %s222, %s223
    %p237 = scmp.eq.s32.totalorder %s21, 1
    %p238 = por %p236, %p237
    %p240 = scmp.ne.s32.totalorder %s223, %s239
    %p241 = scmp.eq.s32.totalorder %s21, 0
    %p242 = por %p240, %p241
    %p243 = scmp.le.s32.totalorder 1, %s15
    %p244 = scmp.lt.s32.totalorder %s15, 3
    %p245 = pnand %p243, %p244
    %p246 = pneg %p245
    // Predicated region
    $region9: #{lenet_forward.2} parent=5 // pred_check
      _
    $region10: #{lenet_forward.2} parent=5 // pred_check_branch
      %248 = sbr.rel (%p245) target = $region12
    $region11: #{lenet_forward.2} parent=5 // pred_region
      %s249 = ssub.s32 %s15, 1
      // Predicated region
      $region13: #{lenet_forward.2} parent=11 // pred_check
        %p250 = pneg %p62
      $region14: #{lenet_forward.2} parent=11 // pred_check_branch
        %252 = sbr.rel (%p250) target = $region16
      $region15: #{lenet_forward.2} parent=11 // pred_region
        _
      $region16: #{lenet_forward.2} parent=11 // pred_fallthru
        _
      // Predicated region
      $region17: #{lenet_forward.2} parent=11 // pred_check
        %p253 = pneg %p83
      $region18: #{lenet_forward.2} parent=11 // pred_check_branch
        %255 = sbr.rel (%p253) target = $region20
      $region19: #{lenet_forward.2} parent=11 // pred_region
        _
      $region20: #{lenet_forward.2} parent=11 // pred_fallthru
        _
      // Predicated region
      $region21: #{lenet_forward.2} parent=11 // pred_check
        %p256 = pneg %p104
      $region22: #{lenet_forward.2} parent=11 // pred_check_branch
        %258 = sbr.rel (%p256) target = $region24
      $region23: #{lenet_forward.2} parent=11 // pred_region
        _
      $region24: #{lenet_forward.2} parent=11 // pred_fallthru
        _
      // Predicated region
      $region25: #{lenet_forward.2} parent=11 // pred_check
        %p259 = pneg %p125
      $region26: #{lenet_forward.2} parent=11 // pred_check_branch
        %261 = sbr.rel (%p259) target = $region28
      $region27: #{lenet_forward.2} parent=11 // pred_region
        _
      $region28: #{lenet_forward.2} parent=11 // pred_fallthru
        _
      // Predicated region
      $region29: #{lenet_forward.2} parent=11 // pred_check
        %p262 = pneg %p146
      $region30: #{lenet_forward.2} parent=11 // pred_check_branch
        %264 = sbr.rel (%p262) target = $region32
      $region31: #{lenet_forward.2} parent=11 // pred_region
        _
      $region32: #{lenet_forward.2} parent=11 // pred_fallthru
        _
      // Predicated region
      $region33: #{lenet_forward.2} parent=11 // pred_check
        %p265 = pneg %p167
      $region34: #{lenet_forward.2} parent=11 // pred_check_branch
        %267 = sbr.rel (%p265) target = $region36
      $region35: #{lenet_forward.2} parent=11 // pred_region
        _
      $region36: #{lenet_forward.2} parent=11 // pred_fallthru
        _
      // Predicated region
      $region37: #{lenet_forward.2} parent=11 // pred_check
        %p268 = pneg %p188
      $region38: #{lenet_forward.2} parent=11 // pred_check_branch
        %270 = sbr.rel (%p268) target = $region40
      $region39: #{lenet_forward.2} parent=11 // pred_region
        _
      $region40: #{lenet_forward.2} parent=11 // pred_fallthru
        _
      // Predicated region
      $region41: #{lenet_forward.2} parent=11 // pred_check
        %p271 = pneg %p209
      $region42: #{lenet_forward.2} parent=11 // pred_check_branch
        %273 = sbr.rel (%p271) target = $region44
      $region43: #{lenet_forward.2} parent=11 // pred_region
        _
      $region44: #{lenet_forward.2} parent=11 // pred_fallthru
        _
    $region12: #{lenet_forward.2} parent=5 // pred_fallthru
      _
    %p274 = scmp.lt.s32.totalorder %s15, 2
    // Predicated region
    $region45: #{lenet_forward.2} parent=5 // pred_check
      %p275 = pneg %p274
    $region46: #{lenet_forward.2} parent=5 // pred_check_branch
      %277 = sbr.rel (%p275) target = $region48
    $region47: #{lenet_forward.2} parent=5 // pred_region
      // Predicated region
      $region49: #{lenet_forward.2} parent=47 // pred_check
        %p278 = pneg %p35
      $region50: #{lenet_forward.2} parent=47 // pred_check_branch
        %280 = sbr.rel (%p278) target = $region52
      $region51: #{lenet_forward.2} parent=47 // pred_region
        %p281 = scmp.lt.s32.totalorder %s15, 1
        %s282 = scalar_select %p281, %s15, 1
        %s283 = smul.addr %s282, 4
        %s284 = smul.addr %s283, 8
        %s285 = scalar_lea.vmem %s0, %s284
      $region52: #{lenet_forward.2} parent=47 // pred_fallthru
        _
    $region48: #{lenet_forward.2} parent=5 // pred_fallthru
      _
    %p286 = scmp.le.s32.totalorder 1, %s15
    %p287 = scmp.lt.s32.totalorder %s15, 3
    %p288 = pnand %p286, %p287
    %p289 = pneg %p288
    // Predicated region
    $region53: #{lenet_forward.2} parent=5 // pred_check
      _
    $region54: #{lenet_forward.2} parent=5 // pred_check_branch
      %291 = sbr.rel (%p288) target = $region56
    $region55: #{lenet_forward.2} parent=5 // pred_region
      %s292 = ssub.s32 %s15, 1
      %p293 = scmp.lt.s32.totalorder %s20, 1
      %s294 = scalar_select %p293, %s20, 1
      %s295 = smul.addr %s294, 4
      %s296 = smul.addr %s295, 8
      %s297 = scalar_lea.vmem %s0, %s296
      %p298 = pneg %p41
      %p299 = pneg %p38
      %p300 = pneg %p62
      %p301 = pneg %p59
      %p302 = pneg %p83
      %p303 = pneg %p80
      %p304 = pneg %p104
      %p305 = pneg %p101
      %p306 = pneg %p125
      %p307 = pneg %p122
      %p308 = pneg %p146
      %p309 = pneg %p143
      %p310 = pneg %p167
      %p311 = pneg %p164
      %p312 = pneg %p188
      %p313 = pneg %p185
      %p314 = pneg %p209
      %p315 = pneg %p206
      %p316 = pneg %p235
      %p317 = pneg %p232
      %p318 = scmp.lt.s32.totalorder %s20, 1
      %s319 = scalar_select %p318, %s20, 1
      %s320 = smul.addr %s319, 8
      %s321 = scalar_lea.vmem %s9, %s320
      %p322 = scmp.lt.s32.totalorder %s20, 1
      %s323 = scalar_select %p322, %s20, 1
      %s324 = smul.addr %s323, 4
      %s325 = smul.addr %s324, 8
      %s326 = scalar_lea.vmem %s0, %s325
      %p327 = scmp.lt.s32.totalorder %s20, 1
      %s328 = scalar_select %p327, %s20, 1
      %s329 = smul.addr %s328, 8
      %s330 = scalar_lea.vmem %s9, %s329
      %v331 = vld [vmem:[%s326] sm:$0xff]
      %v332 = vld [vmem:[%s326 + $0x8] sm:$0xff]
      %v333 = vld [vmem:[%s326 + $0x10] sm:$0xff]
      %v334 = vld [vmem:[%s326 + $0x18] sm:$0xff]
      %v335 = vld [vmem:[%s1] sm:$0xff]
      %v336 = vld [vmem:[%s1 + $0x8] sm:$0xff]
      %v337 = vld [vmem:[%s1 + $0x10] sm:$0xff]
      %v338 = vld [vmem:[%s1 + $0x18] sm:$0xff]
      %v339 = vld [vmem:[%s1 + $0x20] sm:$0xff]
      %v340 = vld [vmem:[%s1 + $0x28] sm:$0xff]
      %v341 = vld [vmem:[%s1 + $0x30] sm:$0xff]
      %v342 = vld [vmem:[%s1 + $0x38] sm:$0xff]
      %s343 = scalar_lea.vmem %s1, 64
      %v344 = vld [vmem:[%s343] sm:$0xff]
      %v345 = vld [vmem:[%s343 + $0x8] sm:$0xff]
      %v346 = vld [vmem:[%s343 + $0x10] sm:$0xff]
      %v347 = vld [vmem:[%s343 + $0x18] sm:$0xff]
      %v348 = vld [vmem:[%s343 + $0x20] sm:$0xff]
      %v349 = vld [vmem:[%s343 + $0x28] sm:$0xff]
      %v350 = vld [vmem:[%s343 + $0x30] sm:$0xff]
      %v351 = vld [vmem:[%s343 + $0x38] sm:$0xff]
      %vm356 = vcmask 1046528
      %v357 = vrot.slane %v331, 1
      %v358 = vrot.slane %v332, 1
      %v359 = vsel %vm356, %v357, %v358
      %v360 = vrot.slane %v333, 1
      %v361 = vsel %vm356, %v358, %v360
      %v362 = vrot.slane %v334, 1
      %v363 = vsel %vm356, %v360, %v362
      %vm364 = vcmask 261120
      %v365 = vsel %vm364, %v359, 0
      %v367 = vsel %vm364, %v361, 0
      %v369 = vsel %vm364, %v363, 0
      %v371 = vsel %vm364, %v362, 0
      %373 = vmatprep.subr.mxu0 0.0
      %374 = vmatpush1.msra.mxu0 0.0
      %375 = vmatprep.subr.mxu0 0.0
      %376 = vmatpush1.msra.mxu0 0.0
      %377 = vmatprep.subr.mxu0 0.0
      %378 = vmatpush1.msra.mxu0 0.0
      %379 = vmatprep.subr.mxu0 0.0
      %380 = vmatpush1.msra.mxu0 0.0
      %381 = vmatprep.subr.mxu0 0.0
      %382 = vmatpush1.msra.mxu0 0.0
      %383 = vmatprep.subr.mxu0 0.0
      %384 = vmatpush1.msra.mxu0 0.0
      %385 = vmatprep.subr.mxu0 0.0
      %386 = vmatpush1.msra.mxu0 0.0
      %387 = vmatprep.subr.mxu0 0.0
      %388 = vmatpush1.msra.mxu0 0.0
      %389 = vmatprep.subr.mxu0 0.0
      %390 = vmatpush1.msra.mxu0 0.0
      %391 = vmatprep.subr.mxu0 0.0
      %392 = vmatpush1.msra.mxu0 0.0
      %393 = vmatprep.subr.mxu0 0.0
      %394 = vmatpush1.msra.mxu0 0.0
      %395 = vmatprep.subr.mxu0 0.0
      %396 = vmatpush1.msra.mxu0 0.0
      %397 = vmatprep.subr.mxu0 %v351
      %398 = vmatpush1.msra.mxu0 %v350
      %399 = vmatprep.subr.mxu0 %v349
      %400 = vmatpush1.msra.mxu0 %v348
      %401 = vmatprep.subr.mxu0 %v347
      %402 = vmatpush1.msra.mxu0 %v346
      %403 = vmatprep.subr.mxu0 %v345
      %404 = vmatpush1.msra.mxu0 %v344
      %405 = vmatprep.subr.mxu0 0.0
      %406 = vmatpush2.msra.mxu0 0.0
      %407 = vmatprep.subr.mxu0 0.0
      %408 = vmatpush2.msra.mxu0 0.0
      %409 = vmatprep.subr.mxu0 0.0
      %410 = vmatpush2.msra.mxu0 0.0
      %411 = vmatprep.subr.mxu0 0.0
      %412 = vmatpush2.msra.mxu0 0.0
      %413 = vmatprep.subr.mxu0 0.0
      %414 = vmatpush2.msra.mxu0 0.0
      %415 = vmatprep.subr.mxu0 0.0
      %416 = vmatpush2.msra.mxu0 0.0
      %417 = vmatprep.subr.mxu0 0.0
      %418 = vmatpush2.msra.mxu0 0.0
      %419 = vmatprep.subr.mxu0 0.0
      %420 = vmatpush2.msra.mxu0 0.0
      %421 = vmatprep.subr.mxu0 0.0
      %422 = vmatpush2.msra.mxu0 0.0
      %423 = vmatprep.subr.mxu0 0.0
      %424 = vmatpush2.msra.mxu0 0.0
      %425 = vmatprep.subr.mxu0 0.0
      %426 = vmatpush2.msra.mxu0 0.0
      %427 = vmatprep.subr.mxu0 0.0
      %428 = vmatpush2.msra.mxu0 0.0
      %429 = vmatprep.subr.mxu0 0.0
      %430 = vmatpush2.msra.mxu0 0.0
      %431 = vmatprep.subr.mxu0 0.0
      %432 = vmatpush2.msra.mxu0 0.0
      %433 = vmatprep.subr.mxu0 0.0
      %434 = vmatpush2.msra.mxu0 0.0
      %435 = vmatprep.subr.mxu0 0.0
      %436 = vmatpush2.msra.mxu0 0.0
      %437 = vmatprep.mubr.f32.mxu0 0.0
      %438 = vmatmul.mubr.f32.gmra.mxu0 %v365
      %v439 = vpop.f32.mrf.mxu0
      %v440 = vadd.f32 0.0, %v439
      %v441 = vpop.f32.mrf.mxu0
      %v442 = vadd.f32 0.0, %v441
      %443 = vmatprep.mubr.f32.mxu0 0.0
      %444 = vmatmul.mubr.f32.gmra.mxu0 %v367
      %v445 = vpop.f32.mrf.mxu0
      %v446 = vadd.f32 0.0, %v445
      %v447 = vpop.f32.mrf.mxu0
      %v448 = vadd.f32 0.0, %v447
      %449 = vmatprep.mubr.f32.mxu0 0.0
      %450 = vmatmul.mubr.f32.gmra.mxu0 %v369
      %v451 = vpop.f32.mrf.mxu0
      %v452 = vadd.f32 0.0, %v451
      %v453 = vpop.f32.mrf.mxu0
      %v454 = vadd.f32 0.0, %v453
      %455 = vmatprep.mubr.f32.mxu0 0.0
      %456 = vmatmul.mubr.f32.gmra.mxu0 %v371
      %v457 = vpop.f32.mrf.mxu0
      %v458 = vadd.f32 0.0, %v457
      %v459 = vpop.f32.mrf.mxu0
      %v460 = vadd.f32 0.0, %v459
      %461 = vdwg.mxu0
      %v462 = vsel %vm364, %v331, 0
      %v464 = vsel %vm364, %v332, 0
      %v466 = vsel %vm364, %v333, 0
      %v468 = vsel %vm364, %v334, 0
      %470 = vmatprep.subr.mxu0 0.0
      %471 = vmatpush1.msra.mxu0 0.0
      %472 = vmatprep.subr.mxu0 0.0
      %473 = vmatpush1.msra.mxu0 0.0
      %474 = vmatprep.subr.mxu0 0.0
      %475 = vmatpush1.msra.mxu0 0.0
      %476 = vmatprep.subr.mxu0 0.0
      %477 = vmatpush1.msra.mxu0 0.0
      %478 = vmatprep.subr.mxu0 0.0
      %479 = vmatpush1.msra.mxu0 0.0
      %480 = vmatprep.subr.mxu0 0.0
      %481 = vmatpush1.msra.mxu0 0.0
      %482 = vmatprep.subr.mxu0 0.0
      %483 = vmatpush1.msra.mxu0 0.0
      %484 = vmatprep.subr.mxu0 0.0
      %485 = vmatpush1.msra.mxu0 0.0
      %486 = vmatprep.subr.mxu0 0.0
      %487 = vmatpush1.msra.mxu0 0.0
      %488 = vmatprep.subr.mxu0 0.0
      %489 = vmatpush1.msra.mxu0 0.0
      %490 = vmatprep.subr.mxu0 0.0
      %491 = vmatpush1.msra.mxu0 0.0
      %492 = vmatprep.subr.mxu0 0.0
      %493 = vmatpush1.msra.mxu0 0.0
      %494 = vmatprep.subr.mxu0 %v342
      %495 = vmatpush1.msra.mxu0 %v341
      %496 = vmatprep.subr.mxu0 %v340
      %497 = vmatpush1.msra.mxu0 %v339
      %498 = vmatprep.subr.mxu0 %v338
      %499 = vmatpush1.msra.mxu0 %v337
      %500 = vmatprep.subr.mxu0 %v336
      %501 = vmatpush1.msra.mxu0 %v335
      %502 = vmatprep.subr.mxu0 0.0
      %503 = vmatpush2.msra.mxu0 0.0
      %504 = vmatprep.subr.mxu0 0.0
      %505 = vmatpush2.msra.mxu0 0.0
      %506 = vmatprep.subr.mxu0 0.0
      %507 = vmatpush2.msra.mxu0 0.0
      %508 = vmatprep.subr.mxu0 0.0
      %509 = vmatpush2.msra.mxu0 0.0
      %510 = vmatprep.subr.mxu0 0.0
      %511 = vmatpush2.msra.mxu0 0.0
      %512 = vmatprep.subr.mxu0 0.0
      %513 = vmatpush2.msra.mxu0 0.0
      %514 = vmatprep.subr.mxu0 0.0
      %515 = vmatpush2.msra.mxu0 0.0
      %516 = vmatprep.subr.mxu0 0.0
      %517 = vmatpush2.msra.mxu0 0.0
      %518 = vmatprep.subr.mxu0 0.0
      %519 = vmatpush2.msra.mxu0 0.0
      %520 = vmatprep.subr.mxu0 0.0
      %521 = vmatpush2.msra.mxu0 0.0
      %522 = vmatprep.subr.mxu0 0.0
      %523 = vmatpush2.msra.mxu0 0.0
      %524 = vmatprep.subr.mxu0 0.0
      %525 = vmatpush2.msra.mxu0 0.0
      %526 = vmatprep.subr.mxu0 0.0
      %527 = vmatpush2.msra.mxu0 0.0
      %528 = vmatprep.subr.mxu0 0.0
      %529 = vmatpush2.msra.mxu0 0.0
      %530 = vmatprep.subr.mxu0 0.0
      %531 = vmatpush2.msra.mxu0 0.0
      %532 = vmatprep.subr.mxu0 0.0
      %533 = vmatpush2.msra.mxu0 0.0
      %534 = vmatprep.mubr.f32.mxu0 0.0
      %535 = vmatmul.mubr.f32.gmra.mxu0 %v462
      %v536 = vpop.f32.mrf.mxu0
      %v537 = vadd.f32 %v440, %v536
      %v538 = vpop.f32.mrf.mxu0
      %v539 = vadd.f32 %v442, %v538
      %540 = vmatprep.mubr.f32.mxu0 0.0
      %541 = vmatmul.mubr.f32.gmra.mxu0 %v464
      %v542 = vpop.f32.mrf.mxu0
      %v543 = vadd.f32 %v446, %v542
      %v544 = vpop.f32.mrf.mxu0
      %v545 = vadd.f32 %v448, %v544
      %546 = vmatprep.mubr.f32.mxu0 0.0
      %547 = vmatmul.mubr.f32.gmra.mxu0 %v466
      %v548 = vpop.f32.mrf.mxu0
      %v549 = vadd.f32 %v452, %v548
      %v550 = vpop.f32.mrf.mxu0
      %v551 = vadd.f32 %v454, %v550
      %552 = vmatprep.mubr.f32.mxu0 0.0
      %553 = vmatmul.mubr.f32.gmra.mxu0 %v468
      %v554 = vpop.f32.mrf.mxu0
      %v555 = vadd.f32 %v458, %v554
      %v556 = vpop.f32.mrf.mxu0
      %v557 = vadd.f32 %v460, %v556
      %558 = vdwg.mxu0
      %s559 = scalar_lea.vmem %s1, 128
      %v560 = vld [vmem:[%s559] sm:$0xff]
      %v561 = vld [vmem:[%s559 + $0x8] sm:$0xff]
      %v562 = vld [vmem:[%s559 + $0x10] sm:$0xff]
      %v563 = vld [vmem:[%s559 + $0x18] sm:$0xff]
      %v564 = vld [vmem:[%s559 + $0x20] sm:$0xff]
      %v565 = vld [vmem:[%s559 + $0x28] sm:$0xff]
      %v566 = vld [vmem:[%s559 + $0x30] sm:$0xff]
      %v567 = vld [vmem:[%s559 + $0x38] sm:$0xff]
      %vm568 = vcmask 1045504
      %v569 = vrot.slane %v331, 2
      %v570 = vrot.slane %v332, 2
      %v571 = vsel %vm568, %v569, %v570
      %v572 = vrot.slane %v333, 2
      %v573 = vsel %vm568, %v570, %v572
      %v574 = vrot.slane %v334, 2
      %v575 = vsel %vm568, %v572, %v574
      %v576 = vsel %vm364, %v571, 0
      %v578 = vsel %vm364, %v573, 0
      %v580 = vsel %vm364, %v575, 0
      %v582 = vsel %vm364, %v574, 0
      %584 = vmatprep.subr.mxu0 0.0
      %585 = vmatpush1.msra.mxu0 0.0
      %586 = vmatprep.subr.mxu0 0.0
      %587 = vmatpush1.msra.mxu0 0.0
      %588 = vmatprep.subr.mxu0 0.0
      %589 = vmatpush1.msra.mxu0 0.0
      %590 = vmatprep.subr.mxu0 0.0
      %591 = vmatpush1.msra.mxu0 0.0
      %592 = vmatprep.subr.mxu0 0.0
      %593 = vmatpush1.msra.mxu0 0.0
      %594 = vmatprep.subr.mxu0 0.0
      %595 = vmatpush1.msra.mxu0 0.0
      %596 = vmatprep.subr.mxu0 0.0
      %597 = vmatpush1.msra.mxu0 0.0
      %598 = vmatprep.subr.mxu0 0.0
      %599 = vmatpush1.msra.mxu0 0.0
      %600 = vmatprep.subr.mxu0 0.0
      %601 = vmatpush1.msra.mxu0 0.0
      %602 = vmatprep.subr.mxu0 0.0
      %603 = vmatpush1.msra.mxu0 0.0
      %604 = vmatprep.subr.mxu0 0.0
      %605 = vmatpush1.msra.mxu0 0.0
      %606 = vmatprep.subr.mxu0 0.0
      %607 = vmatpush1.msra.mxu0 0.0
      %608 = vmatprep.subr.mxu0 %v567
      %609 = vmatpush1.msra.mxu0 %v566
      %610 = vmatprep.subr.mxu0 %v565
      %611 = vmatpush1.msra.mxu0 %v564
      %612 = vmatprep.subr.mxu0 %v563
      %613 = vmatpush1.msra.mxu0 %v562
      %614 = vmatprep.subr.mxu0 %v561
      %615 = vmatpush1.msra.mxu0 %v560
      %616 = vmatprep.subr.mxu0 0.0
      %617 = vmatpush2.msra.mxu0 0.0
      %618 = vmatprep.subr.mxu0 0.0
      %619 = vmatpush2.msra.mxu0 0.0
      %620 = vmatprep.subr.mxu0 0.0
      %621 = vmatpush2.msra.mxu0 0.0
      %622 = vmatprep.subr.mxu0 0.0
      %623 = vmatpush2.msra.mxu0 0.0
      %624 = vmatprep.subr.mxu0 0.0
      %625 = vmatpush2.msra.mxu0 0.0
      %626 = vmatprep.subr.mxu0 0.0
      %627 = vmatpush2.msra.mxu0 0.0
      %628 = vmatprep.subr.mxu0 0.0
      %629 = vmatpush2.msra.mxu0 0.0
      %630 = vmatprep.subr.mxu0 0.0
      %631 = vmatpush2.msra.mxu0 0.0
      %632 = vmatprep.subr.mxu0 0.0
      %633 = vmatpush2.msra.mxu0 0.0
      %634 = vmatprep.subr.mxu0 0.0
      %635 = vmatpush2.msra.mxu0 0.0
      %636 = vmatprep.subr.mxu0 0.0
      %637 = vmatpush2.msra.mxu0 0.0
      %638 = vmatprep.subr.mxu0 0.0
      %639 = vmatpush2.msra.mxu0 0.0
      %640 = vmatprep.subr.mxu0 0.0
      %641 = vmatpush2.msra.mxu0 0.0
      %642 = vmatprep.subr.mxu0 0.0
      %643 = vmatpush2.msra.mxu0 0.0
      %644 = vmatprep.subr.mxu0 0.0
      %645 = vmatpush2.msra.mxu0 0.0
      %646 = vmatprep.subr.mxu0 0.0
      %647 = vmatpush2.msra.mxu0 0.0
      %648 = vmatprep.mubr.f32.mxu0 0.0
      %649 = vmatmul.mubr.f32.gmra.mxu0 %v576
      %v650 = vpop.f32.mrf.mxu0
      %v651 = vadd.f32 0.0, %v650
      %v652 = vpop.f32.mrf.mxu0
      %v653 = vadd.f32 0.0, %v652
      %654 = vmatprep.mubr.f32.mxu0 0.0
      %655 = vmatmul.mubr.f32.gmra.mxu0 %v578
      %v656 = vpop.f32.mrf.mxu0
      %v657 = vadd.f32 0.0, %v656
      %v658 = vpop.f32.mrf.mxu0
      %v659 = vadd.f32 0.0, %v658
      %660 = vmatprep.mubr.f32.mxu0 0.0
      %661 = vmatmul.mubr.f32.gmra.mxu0 %v580
      %v662 = vpop.f32.mrf.mxu0
      %v663 = vadd.f32 0.0, %v662
      %v664 = vpop.f32.mrf.mxu0
      %v665 = vadd.f32 0.0, %v664
      %666 = vmatprep.mubr.f32.mxu0 0.0
      %667 = vmatmul.mubr.f32.gmra.mxu0 %v582
      %v668 = vpop.f32.mrf.mxu0
      %v669 = vadd.f32 0.0, %v668
      %v670 = vpop.f32.mrf.mxu0
      %v671 = vadd.f32 0.0, %v670
      %672 = vdwg.mxu0
      %v673 = vadd.f32 %v537, %v651
      %v674 = vadd.f32 %v539, %v653
      %v675 = vadd.f32 %v543, %v657
      %v676 = vadd.f32 %v545, %v659
      %v677 = vadd.f32 %v549, %v663
      %v678 = vadd.f32 %v551, %v665
      %v679 = vadd.f32 %v555, %v669
      %v680 = vadd.f32 %v557, %v671
      %s681 = scalar_lea.vmem %s1, 192
      %v682 = vld [vmem:[%s681] sm:$0xff]
      %v683 = vld [vmem:[%s681 + $0x8] sm:$0xff]
      %v684 = vld [vmem:[%s681 + $0x10] sm:$0xff]
      %v685 = vld [vmem:[%s681 + $0x18] sm:$0xff]
      %v686 = vld [vmem:[%s681 + $0x20] sm:$0xff]
      %v687 = vld [vmem:[%s681 + $0x28] sm:$0xff]
      %v688 = vld [vmem:[%s681 + $0x30] sm:$0xff]
      %v689 = vld [vmem:[%s681 + $0x38] sm:$0xff]
      %vm690 = vcmask 1044480
      %v691 = vrot.slane %v331, 3
      %v692 = vrot.slane %v332, 3
      %v693 = vsel %vm690, %v691, %v692
      %v694 = vrot.slane %v333, 3
      %v695 = vsel %vm690, %v692, %v694
      %v696 = vrot.slane %v334, 3
      %v697 = vsel %vm690, %v694, %v696
      %v698 = vsel %vm364, %v693, 0
      %v700 = vsel %vm364, %v695, 0
      %v702 = vsel %vm364, %v697, 0
      %v704 = vsel %vm364, %v696, 0
      %706 = vmatprep.subr.mxu0 0.0
      %707 = vmatpush1.msra.mxu0 0.0
      %708 = vmatprep.subr.mxu0 0.0
      %709 = vmatpush1.msra.mxu0 0.0
      %710 = vmatprep.subr.mxu0 0.0
      %711 = vmatpush1.msra.mxu0 0.0
      %712 = vmatprep.subr.mxu0 0.0
      %713 = vmatpush1.msra.mxu0 0.0
      %714 = vmatprep.subr.mxu0 0.0
      %715 = vmatpush1.msra.mxu0 0.0
      %716 = vmatprep.subr.mxu0 0.0
      %717 = vmatpush1.msra.mxu0 0.0
      %718 = vmatprep.subr.mxu0 0.0
      %719 = vmatpush1.msra.mxu0 0.0
      %720 = vmatprep.subr.mxu0 0.0
      %721 = vmatpush1.msra.mxu0 0.0
      %722 = vmatprep.subr.mxu0 0.0
      %723 = vmatpush1.msra.mxu0 0.0
      %724 = vmatprep.subr.mxu0 0.0
      %725 = vmatpush1.msra.mxu0 0.0
      %726 = vmatprep.subr.mxu0 0.0
      %727 = vmatpush1.msra.mxu0 0.0
      %728 = vmatprep.subr.mxu0 0.0
      %729 = vmatpush1.msra.mxu0 0.0
      %730 = vmatprep.subr.mxu0 %v689
      %731 = vmatpush1.msra.mxu0 %v688
      %732 = vmatprep.subr.mxu0 %v687
      %733 = vmatpush1.msra.mxu0 %v686
      %734 = vmatprep.subr.mxu0 %v685
      %735 = vmatpush1.msra.mxu0 %v684
      %736 = vmatprep.subr.mxu0 %v683
      %737 = vmatpush1.msra.mxu0 %v682
      %738 = vmatprep.subr.mxu0 0.0
      %739 = vmatpush2.msra.mxu0 0.0
      %740 = vmatprep.subr.mxu0 0.0
      %741 = vmatpush2.msra.mxu0 0.0
      %742 = vmatprep.subr.mxu0 0.0
      %743 = vmatpush2.msra.mxu0 0.0
      %744 = vmatprep.subr.mxu0 0.0
      %745 = vmatpush2.msra.mxu0 0.0
      %746 = vmatprep.subr.mxu0 0.0
      %747 = vmatpush2.msra.mxu0 0.0
      %748 = vmatprep.subr.mxu0 0.0
      %749 = vmatpush2.msra.mxu0 0.0
      %750 = vmatprep.subr.mxu0 0.0
      %751 = vmatpush2.msra.mxu0 0.0
      %752 = vmatprep.subr.mxu0 0.0
      %753 = vmatpush2.msra.mxu0 0.0
      %754 = vmatprep.subr.mxu0 0.0
      %755 = vmatpush2.msra.mxu0 0.0
      %756 = vmatprep.subr.mxu0 0.0
      %757 = vmatpush2.msra.mxu0 0.0
      %758 = vmatprep.subr.mxu0 0.0
      %759 = vmatpush2.msra.mxu0 0.0
      %760 = vmatprep.subr.mxu0 0.0
      %761 = vmatpush2.msra.mxu0 0.0
      %762 = vmatprep.subr.mxu0 0.0
      %763 = vmatpush2.msra.mxu0 0.0
      %764 = vmatprep.subr.mxu0 0.0
      %765 = vmatpush2.msra.mxu0 0.0
      %766 = vmatprep.subr.mxu0 0.0
      %767 = vmatpush2.msra.mxu0 0.0
      %768 = vmatprep.subr.mxu0 0.0
      %769 = vmatpush2.msra.mxu0 0.0
      %770 = vmatprep.mubr.f32.mxu0 0.0
      %771 = vmatmul.mubr.f32.gmra.mxu0 %v698
      %v772 = vpop.f32.mrf.mxu0
      %v773 = vadd.f32 0.0, %v772
      %v774 = vpop.f32.mrf.mxu0
      %v775 = vadd.f32 0.0, %v774
      %776 = vmatprep.mubr.f32.mxu0 0.0
      %777 = vmatmul.mubr.f32.gmra.mxu0 %v700
      %v778 = vpop.f32.mrf.mxu0
      %v779 = vadd.f32 0.0, %v778
      %v780 = vpop.f32.mrf.mxu0
      %v781 = vadd.f32 0.0, %v780
      %782 = vmatprep.mubr.f32.mxu0 0.0
      %783 = vmatmul.mubr.f32.gmra.mxu0 %v702
      %v784 = vpop.f32.mrf.mxu0
      %v785 = vadd.f32 0.0, %v784
      %v786 = vpop.f32.mrf.mxu0
      %v787 = vadd.f32 0.0, %v786
      %788 = vmatprep.mubr.f32.mxu0 0.0
      %789 = vmatmul.mubr.f32.gmra.mxu0 %v704
      %v790 = vpop.f32.mrf.mxu0
      %v791 = vadd.f32 0.0, %v790
      %v792 = vpop.f32.mrf.mxu0
      %v793 = vadd.f32 0.0, %v792
      %794 = vdwg.mxu0
      %v795 = vadd.f32 %v673, %v773
      %v796 = vadd.f32 %v674, %v775
      %v797 = vadd.f32 %v675, %v779
      %v798 = vadd.f32 %v676, %v781
      %v799 = vadd.f32 %v677, %v785
      %v800 = vadd.f32 %v678, %v787
      %v801 = vadd.f32 %v679, %v791
      %v802 = vadd.f32 %v680, %v793
      %s803 = scalar_lea.vmem %s1, 256
      %v804 = vld [vmem:[%s803] sm:$0xff]
      %v805 = vld [vmem:[%s803 + $0x8] sm:$0xff]
      %v806 = vld [vmem:[%s803 + $0x10] sm:$0xff]
      %v807 = vld [vmem:[%s803 + $0x18] sm:$0xff]
      %v808 = vld [vmem:[%s803 + $0x20] sm:$0xff]
      %v809 = vld [vmem:[%s803 + $0x28] sm:$0xff]
      %v810 = vld [vmem:[%s803 + $0x30] sm:$0xff]
      %v811 = vld [vmem:[%s803 + $0x38] sm:$0xff]
      %vm812 = vcmask 1043456
      %v813 = vrot.slane %v331, 4
      %v814 = vrot.slane %v332, 4
      %v815 = vsel %vm812, %v813, %v814
      %v816 = vrot.slane %v333, 4
      %v817 = vsel %vm812, %v814, %v816
      %v818 = vrot.slane %v334, 4
      %v819 = vsel %vm812, %v816, %v818
      %v820 = vsel %vm364, %v815, 0
      %v822 = vsel %vm364, %v817, 0
      %v824 = vsel %vm364, %v819, 0
      %v826 = vsel %vm364, %v818, 0
      %828 = vmatprep.subr.mxu0 0.0
      %829 = vmatpush1.msra.mxu0 0.0
      %830 = vmatprep.subr.mxu0 0.0
      %831 = vmatpush1.msra.mxu0 0.0
      %832 = vmatprep.subr.mxu0 0.0
      %833 = vmatpush1.msra.mxu0 0.0
      %834 = vmatprep.subr.mxu0 0.0
      %835 = vmatpush1.msra.mxu0 0.0
      %836 = vmatprep.subr.mxu0 0.0
      %837 = vmatpush1.msra.mxu0 0.0
      %838 = vmatprep.subr.mxu0 0.0
      %839 = vmatpush1.msra.mxu0 0.0
      %840 = vmatprep.subr.mxu0 0.0
      %841 = vmatpush1.msra.mxu0 0.0
      %842 = vmatprep.subr.mxu0 0.0
      %843 = vmatpush1.msra.mxu0 0.0
      %844 = vmatprep.subr.mxu0 0.0
      %845 = vmatpush1.msra.mxu0 0.0
      %846 = vmatprep.subr.mxu0 0.0
      %847 = vmatpush1.msra.mxu0 0.0
      %848 = vmatprep.subr.mxu0 0.0
      %849 = vmatpush1.msra.mxu0 0.0
      %850 = vmatprep.subr.mxu0 0.0
      %851 = vmatpush1.msra.mxu0 0.0
      %852 = vmatprep.subr.mxu0 %v811
      %853 = vmatpush1.msra.mxu0 %v810
      %854 = vmatprep.subr.mxu0 %v809
      %855 = vmatpush1.msra.mxu0 %v808
      %856 = vmatprep.subr.mxu0 %v807
      %857 = vmatpush1.msra.mxu0 %v806
      %858 = vmatprep.subr.mxu0 %v805
      %859 = vmatpush1.msra.mxu0 %v804
      %860 = vmatprep.subr.mxu0 0.0
      %861 = vmatpush2.msra.mxu0 0.0
      %862 = vmatprep.subr.mxu0 0.0
      %863 = vmatpush2.msra.mxu0 0.0
      %864 = vmatprep.subr.mxu0 0.0
      %865 = vmatpush2.msra.mxu0 0.0
      %866 = vmatprep.subr.mxu0 0.0
      %867 = vmatpush2.msra.mxu0 0.0
      %868 = vmatprep.subr.mxu0 0.0
      %869 = vmatpush2.msra.mxu0 0.0
      %870 = vmatprep.subr.mxu0 0.0
      %871 = vmatpush2.msra.mxu0 0.0
      %872 = vmatprep.subr.mxu0 0.0
      %873 = vmatpush2.msra.mxu0 0.0
      %874 = vmatprep.subr.mxu0 0.0
      %875 = vmatpush2.msra.mxu0 0.0
      %876 = vmatprep.subr.mxu0 0.0
      %877 = vmatpush2.msra.mxu0 0.0
      %878 = vmatprep.subr.mxu0 0.0
      %879 = vmatpush2.msra.mxu0 0.0
      %880 = vmatprep.subr.mxu0 0.0
      %881 = vmatpush2.msra.mxu0 0.0
      %882 = vmatprep.subr.mxu0 0.0
      %883 = vmatpush2.msra.mxu0 0.0
      %884 = vmatprep.subr.mxu0 0.0
      %885 = vmatpush2.msra.mxu0 0.0
      %886 = vmatprep.subr.mxu0 0.0
      %887 = vmatpush2.msra.mxu0 0.0
      %888 = vmatprep.subr.mxu0 0.0
      %889 = vmatpush2.msra.mxu0 0.0
      %890 = vmatprep.subr.mxu0 0.0
      %891 = vmatpush2.msra.mxu0 0.0
      %892 = vmatprep.mubr.f32.mxu0 0.0
      %893 = vmatmul.mubr.f32.gmra.mxu0 %v820
      %v894 = vpop.f32.mrf.mxu0
      %v895 = vadd.f32 0.0, %v894
      %v896 = vpop.f32.mrf.mxu0
      %v897 = vadd.f32 0.0, %v896
      %898 = vmatprep.mubr.f32.mxu0 0.0
      %899 = vmatmul.mubr.f32.gmra.mxu0 %v822
      %v900 = vpop.f32.mrf.mxu0
      %v901 = vadd.f32 0.0, %v900
      %v902 = vpop.f32.mrf.mxu0
      %v903 = vadd.f32 0.0, %v902
      %904 = vmatprep.mubr.f32.mxu0 0.0
      %905 = vmatmul.mubr.f32.gmra.mxu0 %v824
      %v906 = vpop.f32.mrf.mxu0
      %v907 = vadd.f32 0.0, %v906
      %v908 = vpop.f32.mrf.mxu0
      %v909 = vadd.f32 0.0, %v908
      %910 = vmatprep.mubr.f32.mxu0 0.0
      %911 = vmatmul.mubr.f32.gmra.mxu0 %v826
      %v912 = vpop.f32.mrf.mxu0
      %v913 = vadd.f32 0.0, %v912
      %v914 = vpop.f32.mrf.mxu0
      %v915 = vadd.f32 0.0, %v914
      %916 = vdwg.mxu0
      %v917 = vadd.f32 %v795, %v895
      %v918 = vadd.f32 %v796, %v897
      %v919 = vadd.f32 %v797, %v901
      %v920 = vadd.f32 %v798, %v903
      %v921 = vadd.f32 %v799, %v907
      %v922 = vadd.f32 %v800, %v909
      %v923 = vadd.f32 %v801, %v913
      %v924 = vadd.f32 %v802, %v915
      %v925 = vld [vmem:[%s2] sm:$0x3]
      %v927 = vlaneseq
      %v928 = vshrl.u32 %v927, 7
      %v929 = vsub.s32 0, %v928
      %v930 = vrot.slane %v925, %v929
      %v931 = vlaneseq
      %v932 = vshrl.u32 %v931, 7
      %v933 = vsub.s32 1, %v932
      %v934 = vrot.slane %v925, %v933
      %v937 = vadd.f32 %v917, %v930
      %v938 = vadd.f32 %v918, %v934
      %v939 = vadd.f32 %v919, %v930
      %v940 = vadd.f32 %v920, %v934
      %v941 = vadd.f32 %v921, %v930
      %v942 = vadd.f32 %v922, %v934
      %v943 = vadd.f32 %v923, %v930
      %v944 = vadd.f32 %v924, %v934
      %v945 = vsub.f32 0.0, %v937
      %v946 = vsub.f32 0.0, %v938
      %v947 = vsub.f32 0.0, %v939
      %v948 = vsub.f32 0.0, %v940
      %v949 = vsub.f32 0.0, %v941
      %v950 = vsub.f32 0.0, %v942
      %v951 = vsub.f32 0.0, %v943
      %v952 = vsub.f32 0.0, %v944
      %v953 = vmul.f32 %v945, 1.442695
      %v954 = vpow.pop %v953
      %v955 = vmul.f32 %v946, 1.442695
      %v956 = vpow.pop %v955
      %v957 = vmul.f32 %v947, 1.442695
      %v958 = vpow.pop %v957
      %v959 = vmul.f32 %v948, 1.442695
      %v960 = vpow.pop %v959
      %v961 = vmul.f32 %v949, 1.442695
      %v962 = vpow.pop %v961
      %v963 = vmul.f32 %v950, 1.442695
      %v964 = vpow.pop %v963
      %v965 = vmul.f32 %v951, 1.442695
      %v966 = vpow.pop %v965
      %v967 = vmul.f32 %v952, 1.442695
      %v968 = vpow.pop %v967
      %v969 = vadd.f32 %v954, 1.0
      %v970 = vadd.f32 %v956, 1.0
      %v971 = vadd.f32 %v958, 1.0
      %v972 = vadd.f32 %v960, 1.0
      %v973 = vadd.f32 %v962, 1.0
      %v974 = vadd.f32 %v964, 1.0
      %v975 = vadd.f32 %v966, 1.0
      %v976 = vadd.f32 %v968, 1.0
      %v977 = vrcp.pop %v969
      %v978 = vrcp.pop %v970
      %v979 = vrcp.pop %v971
      %v980 = vrcp.pop %v972
      %v981 = vrcp.pop %v973
      %v982 = vrcp.pop %v974
      %v983 = vrcp.pop %v975
      %v984 = vrcp.pop %v976
      %v985 = vld [vmem:[%s3] sm:$0xff]
      %v986 = vld [vmem:[%s3 + $0x8] sm:$0x3f]
      %vm987 = vcmask 228352
      %v989 = vsel %vm987, %v985, 0
      %v992 = vsel %vm987, %v986, 0
      %v995 = vsel %vm812, %v983, 0
      %v998 = vsel %vm812, %v984, 0
      %1000 = vmatprep.subr.mxu0 0.0
      %1001 = vmatpush1.msra.mxu0 0.0
      %1002 = vmatprep.subr.mxu0 0.0
      %1003 = vmatpush1.msra.mxu0 0.0
      %1004 = vmatprep.subr.mxu0 0.0
      %1005 = vmatpush1.msra.mxu0 0.0
      %1006 = vmatprep.subr.mxu0 0.0
      %1007 = vmatpush1.msra.mxu0 0.0
      %1008 = vmatprep.subr.mxu0 0.0
      %1009 = vmatpush1.msra.mxu0 0.0
      %1010 = vmatprep.subr.mxu0 0.0
      %1011 = vmatpush1.msra.mxu0 0.0
      %1012 = vmatprep.subr.mxu0 0.0
      %1013 = vmatpush1.msra.mxu0 0.0
      %1014 = vmatprep.subr.mxu0 0.0
      %1015 = vmatpush1.msra.mxu0 0.0
      %1016 = vmatprep.subr.mxu0 0.0
      %1017 = vmatpush1.msra.mxu0 0.0
      %1018 = vmatprep.subr.mxu0 0.0
      %1019 = vmatpush1.msra.mxu0 0.0
      %1020 = vmatprep.subr.mxu0 0.0
      %1021 = vmatpush1.msra.mxu0 0.0
      %1022 = vmatprep.subr.mxu0 0.0
      %1023 = vmatpush1.msra.mxu0 0.0
      %1024 = vmatprep.subr.mxu0 %v998
      %1025 = vmatpush1.msra.mxu0 %v995
      %1026 = vmatprep.subr.mxu0 %v982
      %1027 = vmatpush1.msra.mxu0 %v981
      %1028 = vmatprep.subr.mxu0 %v980
      %1029 = vmatpush1.msra.mxu0 %v979
      %1030 = vmatprep.subr.mxu0 %v978
      %1031 = vmatpush1.msra.mxu0 %v977
      %1032 = vmatprep.subr.mxu0 0.0
      %1033 = vmatpush2.msra.mxu0 0.0
      %1034 = vmatprep.subr.mxu0 0.0
      %1035 = vmatpush2.msra.mxu0 0.0
      %1036 = vmatprep.subr.mxu0 0.0
      %1037 = vmatpush2.msra.mxu0 0.0
      %1038 = vmatprep.subr.mxu0 0.0
      %1039 = vmatpush2.msra.mxu0 0.0
      %1040 = vmatprep.subr.mxu0 0.0
      %1041 = vmatpush2.msra.mxu0 0.0
      %1042 = vmatprep.subr.mxu0 0.0
      %1043 = vmatpush2.msra.mxu0 0.0
      %1044 = vmatprep.subr.mxu0 0.0
      %1045 = vmatpush2.msra.mxu0 0.0
      %1046 = vmatprep.subr.mxu0 0.0
      %1047 = vmatpush2.msra.mxu0 0.0
      %1048 = vmatprep.subr.mxu0 0.0
      %1049 = vmatpush2.msra.mxu0 0.0
      %1050 = vmatprep.subr.mxu0 0.0
      %1051 = vmatpush2.msra.mxu0 0.0
      %1052 = vmatprep.subr.mxu0 0.0
      %1053 = vmatpush2.msra.mxu0 0.0
      %1054 = vmatprep.subr.mxu0 0.0
      %1055 = vmatpush2.msra.mxu0 0.0
      %1056 = vmatprep.subr.mxu0 0.0
      %1057 = vmatpush2.msra.mxu0 0.0
      %1058 = vmatprep.subr.mxu0 0.0
      %1059 = vmatpush2.msra.mxu0 0.0
      %1060 = vmatprep.subr.mxu0 0.0
      %1061 = vmatpush2.msra.mxu0 0.0
      %1062 = vmatprep.subr.mxu0 0.0
      %1063 = vmatpush2.msra.mxu0 0.0
      %1064 = vmatprep.mubr.f32.mxu0 0.0
      %1065 = vmatmul.mubr.f32.gmra.mxu0 %v989
      %v1066 = vpop.f32.mrf.mxu0
      %v1067 = vadd.f32 0.0, %v1066
      %v1068 = vpop.f32.mrf.mxu0
      %v1069 = vadd.f32 0.0, %v1068
      %1070 = vmatprep.mubr.f32.mxu0 0.0
      %1071 = vmatmul.mubr.f32.gmra.mxu0 %v992
      %v1072 = vpop.f32.mrf.mxu0
      %v1073 = vadd.f32 0.0, %v1072
      %v1074 = vpop.f32.mrf.mxu0
      %v1075 = vadd.f32 0.0, %v1074
      %1076 = vdwg.mxu0
      %v1077 = vld [vmem:[%s4] sm:$0xff]
      %v1078 = vld [vmem:[%s4 + $0x8] sm:$0xff]
      %v1079 = vld [vmem:[%s4 + $0x10] sm:$0xff]
      %v1080 = vld [vmem:[%s4 + $0x18] sm:$0xff]
      %v1081 = vld [vmem:[%s4 + $0x20] sm:$0xff]
      %v1082 = vld [vmem:[%s4 + $0x28] sm:$0xff]
      %v1083 = vld [vmem:[%s4 + $0x30] sm:$0xff]
      %v1084 = vld [vmem:[%s4 + $0x38] sm:$0xff]
      %v1085 = vld [vmem:[%s4 + $0x40] sm:$0xff]
      %v1086 = vld [vmem:[%s4 + $0x48] sm:$0xff]
      %v1087 = vld [vmem:[%s4 + $0x50] sm:$0xff]
      %v1088 = vld [vmem:[%s4 + $0x58] sm:$0xff]
      %v1089 = vld [vmem:[%s4 + $0x60] sm:$0xff]
      %v1090 = vld [vmem:[%s4 + $0x68] sm:$0xff]
      %v1091 = vld [vmem:[%s4 + $0x70] sm:$0xff]
      %v1092 = vld [vmem:[%s4 + $0x78] sm:$0xff]
      %v1093 = vld [vmem:[%s4 + $0x80] sm:$0xff]
      %v1094 = vld [vmem:[%s4 + $0x88] sm:$0xff]
      %v1095 = vld [vmem:[%s4 + $0x90] sm:$0xff]
      %v1096 = vld [vmem:[%s4 + $0x98] sm:$0xff]
      %v1097 = vld [vmem:[%s4 + $0xa0] sm:$0xff]
      %vm1098 = vcmask 326656
      %v1100 = vsel %vm1098, %v1069, 0
      %v1103 = vsel %vm1098, %v1075, 0
      %1105 = vmatprep.subr.mxu0 0.0
      %1106 = vmatpush1.msra.mxu0 %v1092
      %1107 = vmatprep.subr.mxu0 0.0
      %1108 = vmatpush1.msra.mxu0 %v1091
      %1109 = vmatprep.subr.mxu0 0.0
      %1110 = vmatpush1.msra.mxu0 %v1090
      %1111 = vmatprep.subr.mxu0 0.0
      %1112 = vmatpush1.msra.mxu0 %v1089
      %1113 = vmatprep.subr.mxu0 0.0
      %1114 = vmatpush1.msra.mxu0 %v1088
      %1115 = vmatprep.subr.mxu0 0.0
      %1116 = vmatpush1.msra.mxu0 %v1087
      %1117 = vmatprep.subr.mxu0 0.0
      %1118 = vmatpush1.msra.mxu0 %v1086
      %1119 = vmatprep.subr.mxu0 0.0
      %1120 = vmatpush1.msra.mxu0 %v1085
      %1121 = vmatprep.subr.mxu0 0.0
      %1122 = vmatpush1.msra.mxu0 %v1084
      %1123 = vmatprep.subr.mxu0 0.0
      %1124 = vmatpush1.msra.mxu0 %v1083
      %1125 = vmatprep.subr.mxu0 0.0
      %1126 = vmatpush1.msra.mxu0 %v1082
      %1127 = vmatprep.subr.mxu0 0.0
      %1128 = vmatpush1.msra.mxu0 %v1081
      %1129 = vmatprep.subr.mxu0 0.0
      %1130 = vmatpush1.msra.mxu0 %v1080
      %1131 = vmatprep.subr.mxu0 0.0
      %1132 = vmatpush1.msra.mxu0 %v1079
      %1133 = vmatprep.subr.mxu0 0.0
      %1134 = vmatpush1.msra.mxu0 %v1078
      %1135 = vmatprep.subr.mxu0 0.0
      %1136 = vmatpush1.msra.mxu0 %v1077
      %1137 = vmatprep.subr.mxu0 0.0
      %1138 = vmatpush2.msra.mxu0 0.0
      %1139 = vmatprep.subr.mxu0 0.0
      %1140 = vmatpush2.msra.mxu0 0.0
      %1141 = vmatprep.subr.mxu0 0.0
      %1142 = vmatpush2.msra.mxu0 0.0
      %1143 = vmatprep.subr.mxu0 0.0
      %1144 = vmatpush2.msra.mxu0 0.0
      %1145 = vmatprep.subr.mxu0 0.0
      %1146 = vmatpush2.msra.mxu0 0.0
      %1147 = vmatprep.subr.mxu0 0.0
      %1148 = vmatpush2.msra.mxu0 0.0
      %1149 = vmatprep.subr.mxu0 0.0
      %1150 = vmatpush2.msra.mxu0 0.0
      %1151 = vmatprep.subr.mxu0 0.0
      %1152 = vmatpush2.msra.mxu0 0.0
      %1153 = vmatprep.subr.mxu0 0.0
      %1154 = vmatpush2.msra.mxu0 0.0
      %1155 = vmatprep.subr.mxu0 0.0
      %1156 = vmatpush2.msra.mxu0 0.0
      %1157 = vmatprep.subr.mxu0 0.0
      %1158 = vmatpush2.msra.mxu0 0.0
      %1159 = vmatprep.subr.mxu0 0.0
      %1160 = vmatpush2.msra.mxu0 %v1097
      %1161 = vmatprep.subr.mxu0 0.0
      %1162 = vmatpush2.msra.mxu0 %v1096
      %1163 = vmatprep.subr.mxu0 0.0
      %1164 = vmatpush2.msra.mxu0 %v1095
      %1165 = vmatprep.subr.mxu0 0.0
      %1166 = vmatpush2.msra.mxu0 %v1094
      %1167 = vmatprep.subr.mxu0 0.0
      %1168 = vmatpush2.msra.mxu0 %v1093
      %1169 = vmatprep.mubr.f32.mxu0 %v1100
      %1170 = vmatmul.mubr.f32.gmra.mxu0 %v1067
      %v1171 = vpop.f32.mrf.mxu0
      %v1172 = vadd.f32 0.0, %v1171
      %v1173 = vpop.f32.mrf.mxu0
      %1174 = vmatprep.mubr.f32.mxu0 %v1103
      %1175 = vmatmul.mubr.f32.gmra.mxu0 %v1073
      %v1176 = vpop.f32.mrf.mxu0
      %v1177 = vadd.f32 0.0, %v1176
      %v1178 = vpop.f32.mrf.mxu0
      %1179 = vdwg.mxu0
      %v1180 = vld [vmem:[%s5] sm:$0xff]
      %v1181 = vld [vmem:[%s5 + $0x8] sm:$0xff]
      %v1182 = vld [vmem:[%s5 + $0x10] sm:$0xff]
      %v1183 = vld [vmem:[%s5 + $0x18] sm:$0xff]
      %v1184 = vld [vmem:[%s5 + $0x20] sm:$0xff]
      %v1185 = vld [vmem:[%s5 + $0x28] sm:$0xff]
      %v1186 = vld [vmem:[%s5 + $0x30] sm:$0xff]
      %v1187 = vld [vmem:[%s5 + $0x38] sm:$0xff]
      %v1188 = vld [vmem:[%s5 + $0x40] sm:$0xff]
      %v1189 = vld [vmem:[%s5 + $0x48] sm:$0xff]
      %v1190 = vld [vmem:[%s5 + $0x50] sm:$0xff]
      %v1191 = vld [vmem:[%s5 + $0x58] sm:$0xff]
      %v1192 = vld [vmem:[%s5 + $0x60] sm:$0xff]
      %v1193 = vld [vmem:[%s5 + $0x68] sm:$0xff]
      %v1194 = vld [vmem:[%s5 + $0x70] sm:$0xff]
      %v1195 = vld [vmem:[%s5 + $0x78] sm:$0xff]
      %v1196 = vld [vmem:[%s5 + $0x80] sm:$0xff]
      %v1197 = vld [vmem:[%s5 + $0x88] sm:$0xff]
      %v1198 = vld [vmem:[%s5 + $0x90] sm:$0xff]
      %v1199 = vld [vmem:[%s5 + $0x98] sm:$0xff]
      %v1200 = vld [vmem:[%s5 + $0xa0] sm:$0xf]
      %v1201 = vld [vmem:[%s5 + $0xa8] sm:$0xf]
      %s1202 = scalar_lea.vmem %s5, 176
      %v1203 = vld [vmem:[%s1202] sm:$0xff]
      %v1204 = vld [vmem:[%s1202 + $0x8] sm:$0xff]
      %v1205 = vld [vmem:[%s1202 + $0x10] sm:$0xff]
      %v1206 = vld [vmem:[%s1202 + $0x18] sm:$0xff]
      %v1207 = vld [vmem:[%s1202 + $0x20] sm:$0xff]
      %v1208 = vld [vmem:[%s1202 + $0x28] sm:$0xff]
      %v1209 = vld [vmem:[%s1202 + $0x30] sm:$0xff]
      %v1210 = vld [vmem:[%s1202 + $0x38] sm:$0xff]
      %v1211 = vld [vmem:[%s1202 + $0x40] sm:$0xff]
      %v1212 = vld [vmem:[%s1202 + $0x48] sm:$0xff]
      %v1213 = vld [vmem:[%s1202 + $0x50] sm:$0xff]
      %v1214 = vld [vmem:[%s1202 + $0x58] sm:$0xff]
      %v1215 = vld [vmem:[%s1202 + $0x60] sm:$0xff]
      %v1216 = vld [vmem:[%s1202 + $0x68] sm:$0xff]
      %v1217 = vld [vmem:[%s1202 + $0x70] sm:$0xff]
      %v1218 = vld [vmem:[%s1202 + $0x78] sm:$0xff]
      %v1219 = vld [vmem:[%s1202 + $0x80] sm:$0xff]
      %v1220 = vld [vmem:[%s1202 + $0x88] sm:$0xff]
      %v1221 = vld [vmem:[%s1202 + $0x90] sm:$0xff]
      %v1222 = vld [vmem:[%s1202 + $0x98] sm:$0xff]
      %v1223 = vld [vmem:[%s1202 + $0xa0] sm:$0xf]
      %v1224 = vld [vmem:[%s1202 + $0xa8] sm:$0xf]
      %v1227 = vrot.slane %v1172, 1
      %v1228 = vrot.slane %v1177, 1
      %v1229 = vsel %vm356, %v1227, %v1228
      %vm1230 = vcmask 687104
      %v1231 = vsel %vm1230, %v1229, 0
      %v1233 = vsel %vm1230, %v1228, 0
      %v1236 = vsel %vm812, %v1223, 0
      %v1239 = vsel %vm812, %v1224, 0
      %1241 = vmatprep.subr.mxu0 0.0
      %1242 = vmatpush1.msra.mxu0 0.0
      %1243 = vmatprep.subr.mxu0 0.0
      %1244 = vmatpush1.msra.mxu0 0.0
      %1245 = vmatprep.subr.mxu0 0.0
      %1246 = vmatpush1.msra.mxu0 0.0
      %1247 = vmatprep.subr.mxu0 0.0
      %1248 = vmatpush1.msra.mxu0 0.0
      %1249 = vmatprep.subr.mxu0 0.0
      %1250 = vmatpush1.msra.mxu0 0.0
      %1251 = vmatprep.subr.mxu0 %v1239
      %1252 = vmatpush1.msra.mxu0 %v1236
      %1253 = vmatprep.subr.mxu0 %v1222
      %1254 = vmatpush1.msra.mxu0 %v1221
      %1255 = vmatprep.subr.mxu0 %v1220
      %1256 = vmatpush1.msra.mxu0 %v1219
      %1257 = vmatprep.subr.mxu0 %v1218
      %1258 = vmatpush1.msra.mxu0 %v1217
      %1259 = vmatprep.subr.mxu0 %v1216
      %1260 = vmatpush1.msra.mxu0 %v1215
      %1261 = vmatprep.subr.mxu0 %v1214
      %1262 = vmatpush1.msra.mxu0 %v1213
      %1263 = vmatprep.subr.mxu0 %v1212
      %1264 = vmatpush1.msra.mxu0 %v1211
      %1265 = vmatprep.subr.mxu0 %v1210
      %1266 = vmatpush1.msra.mxu0 %v1209
      %1267 = vmatprep.subr.mxu0 %v1208
      %1268 = vmatpush1.msra.mxu0 %v1207
      %1269 = vmatprep.subr.mxu0 %v1206
      %1270 = vmatpush1.msra.mxu0 %v1205
      %1271 = vmatprep.subr.mxu0 %v1204
      %1272 = vmatpush1.msra.mxu0 %v1203
      %1273 = vmatprep.subr.mxu0 0.0
      %1274 = vmatpush2.msra.mxu0 0.0
      %1275 = vmatprep.subr.mxu0 0.0
      %1276 = vmatpush2.msra.mxu0 0.0
      %1277 = vmatprep.subr.mxu0 0.0
      %1278 = vmatpush2.msra.mxu0 0.0
      %1279 = vmatprep.subr.mxu0 0.0
      %1280 = vmatpush2.msra.mxu0 0.0
      %1281 = vmatprep.subr.mxu0 0.0
      %1282 = vmatpush2.msra.mxu0 0.0
      %1283 = vmatprep.subr.mxu0 0.0
      %1284 = vmatpush2.msra.mxu0 0.0
      %1285 = vmatprep.subr.mxu0 0.0
      %1286 = vmatpush2.msra.mxu0 0.0
      %1287 = vmatprep.subr.mxu0 0.0
      %1288 = vmatpush2.msra.mxu0 0.0
      %1289 = vmatprep.subr.mxu0 0.0
      %1290 = vmatpush2.msra.mxu0 0.0
      %1291 = vmatprep.subr.mxu0 0.0
      %1292 = vmatpush2.msra.mxu0 0.0
      %1293 = vmatprep.subr.mxu0 0.0
      %1294 = vmatpush2.msra.mxu0 0.0
      %1295 = vmatprep.subr.mxu0 0.0
      %1296 = vmatpush2.msra.mxu0 0.0
      %1297 = vmatprep.subr.mxu0 0.0
      %1298 = vmatpush2.msra.mxu0 0.0
      %1299 = vmatprep.subr.mxu0 0.0
      %1300 = vmatpush2.msra.mxu0 0.0
      %1301 = vmatprep.subr.mxu0 0.0
      %1302 = vmatpush2.msra.mxu0 0.0
      %1303 = vmatprep.subr.mxu0 0.0
      %1304 = vmatpush2.msra.mxu0 0.0
      %1305 = vmatprep.mubr.f32.mxu0 0.0
      %1306 = vmatmul.mubr.f32.gmra.mxu0 %v1231
      %v1307 = vpop.f32.mrf.mxu0
      %v1308 = vadd.f32 0.0, %v1307
      %v1309 = vpop.f32.mrf.mxu0
      %v1310 = vadd.f32 0.0, %v1309
      %1311 = vmatprep.mubr.f32.mxu0 0.0
      %1312 = vmatmul.mubr.f32.gmra.mxu0 %v1233
      %v1313 = vpop.f32.mrf.mxu0
      %v1314 = vadd.f32 0.0, %v1313
      %v1315 = vpop.f32.mrf.mxu0
      %v1316 = vadd.f32 0.0, %v1315
      %1317 = vdwg.mxu0
      %v1318 = vsel %vm1230, %v1172, 0
      %v1320 = vsel %vm1230, %v1177, 0
      %v1323 = vsel %vm812, %v1200, 0
      %v1326 = vsel %vm812, %v1201, 0
      %1328 = vmatprep.subr.mxu0 0.0
      %1329 = vmatpush1.msra.mxu0 0.0
      %1330 = vmatprep.subr.mxu0 0.0
      %1331 = vmatpush1.msra.mxu0 0.0
      %1332 = vmatprep.subr.mxu0 0.0
      %1333 = vmatpush1.msra.mxu0 0.0
      %1334 = vmatprep.subr.mxu0 0.0
      %1335 = vmatpush1.msra.mxu0 0.0
      %1336 = vmatprep.subr.mxu0 0.0
      %1337 = vmatpush1.msra.mxu0 0.0
      %1338 = vmatprep.subr.mxu0 %v1326
      %1339 = vmatpush1.msra.mxu0 %v1323
      %1340 = vmatprep.subr.mxu0 %v1199
      %1341 = vmatpush1.msra.mxu0 %v1198
      %1342 = vmatprep.subr.mxu0 %v1197
      %1343 = vmatpush1.msra.mxu0 %v1196
      %1344 = vmatprep.subr.mxu0 %v1195
      %1345 = vmatpush1.msra.mxu0 %v1194
      %1346 = vmatprep.subr.mxu0 %v1193
      %1347 = vmatpush1.msra.mxu0 %v1192
      %1348 = vmatprep.subr.mxu0 %v1191
      %1349 = vmatpush1.msra.mxu0 %v1190
      %1350 = vmatprep.subr.mxu0 %v1189
      %1351 = vmatpush1.msra.mxu0 %v1188
      %1352 = vmatprep.subr.mxu0 %v1187
      %1353 = vmatpush1.msra.mxu0 %v1186
      %1354 = vmatprep.subr.mxu0 %v1185
      %1355 = vmatpush1.msra.mxu0 %v1184
      %1356 = vmatprep.subr.mxu0 %v1183
      %1357 = vmatpush1.msra.mxu0 %v1182
      %1358 = vmatprep.subr.mxu0 %v1181
      %1359 = vmatpush1.msra.mxu0 %v1180
      %1360 = vmatprep.subr.mxu0 0.0
      %1361 = vmatpush2.msra.mxu0 0.0
      %1362 = vmatprep.subr.mxu0 0.0
      %1363 = vmatpush2.msra.mxu0 0.0
      %1364 = vmatprep.subr.mxu0 0.0
      %1365 = vmatpush2.msra.mxu0 0.0
      %1366 = vmatprep.subr.mxu0 0.0
      %1367 = vmatpush2.msra.mxu0 0.0
      %1368 = vmatprep.subr.mxu0 0.0
      %1369 = vmatpush2.msra.mxu0 0.0
      %1370 = vmatprep.subr.mxu0 0.0
      %1371 = vmatpush2.msra.mxu0 0.0
      %1372 = vmatprep.subr.mxu0 0.0
      %1373 = vmatpush2.msra.mxu0 0.0
      %1374 = vmatprep.subr.mxu0 0.0
      %1375 = vmatpush2.msra.mxu0 0.0
      %1376 = vmatprep.subr.mxu0 0.0
      %1377 = vmatpush2.msra.mxu0 0.0
      %1378 = vmatprep.subr.mxu0 0.0
      %1379 = vmatpush2.msra.mxu0 0.0
      %1380 = vmatprep.subr.mxu0 0.0
      %1381 = vmatpush2.msra.mxu0 0.0
      %1382 = vmatprep.subr.mxu0 0.0
      %1383 = vmatpush2.msra.mxu0 0.0
      %1384 = vmatprep.subr.mxu0 0.0
      %1385 = vmatpush2.msra.mxu0 0.0
      %1386 = vmatprep.subr.mxu0 0.0
      %1387 = vmatpush2.msra.mxu0 0.0
      %1388 = vmatprep.subr.mxu0 0.0
      %1389 = vmatpush2.msra.mxu0 0.0
      %1390 = vmatprep.subr.mxu0 0.0
      %1391 = vmatpush2.msra.mxu0 0.0
      %1392 = vmatprep.mubr.f32.mxu0 0.0
      %1393 = vmatmul.mubr.f32.gmra.mxu0 %v1318
      %v1394 = vpop.f32.mrf.mxu0
      %v1395 = vadd.f32 %v1308, %v1394
      %v1396 = vpop.f32.mrf.mxu0
      %v1397 = vadd.f32 %v1310, %v1396
      %1398 = vmatprep.mubr.f32.mxu0 0.0
      %1399 = vmatmul.mubr.f32.gmra.mxu0 %v1320
      %v1400 = vpop.f32.mrf.mxu0
      %v1401 = vadd.f32 %v1314, %v1400
      %v1402 = vpop.f32.mrf.mxu0
      %v1403 = vadd.f32 %v1316, %v1402
      %1404 = vdwg.mxu0
      %s1405 = scalar_lea.vmem %s5, 352
      %v1406 = vld [vmem:[%s1405] sm:$0xff]
      %v1407 = vld [vmem:[%s1405 + $0x8] sm:$0xff]
      %v1408 = vld [vmem:[%s1405 + $0x10] sm:$0xff]
      %v1409 = vld [vmem:[%s1405 + $0x18] sm:$0xff]
      %v1410 = vld [vmem:[%s1405 + $0x20] sm:$0xff]
      %v1411 = vld [vmem:[%s1405 + $0x28] sm:$0xff]
      %v1412 = vld [vmem:[%s1405 + $0x30] sm:$0xff]
      %v1413 = vld [vmem:[%s1405 + $0x38] sm:$0xff]
      %v1414 = vld [vmem:[%s1405 + $0x40] sm:$0xff]
      %v1415 = vld [vmem:[%s1405 + $0x48] sm:$0xff]
      %v1416 = vld [vmem:[%s1405 + $0x50] sm:$0xff]
      %v1417 = vld [vmem:[%s1405 + $0x58] sm:$0xff]
      %v1418 = vld [vmem:[%s1405 + $0x60] sm:$0xff]
      %v1419 = vld [vmem:[%s1405 + $0x68] sm:$0xff]
      %v1420 = vld [vmem:[%s1405 + $0x70] sm:$0xff]
      %v1421 = vld [vmem:[%s1405 + $0x78] sm:$0xff]
      %v1422 = vld [vmem:[%s1405 + $0x80] sm:$0xff]
      %v1423 = vld [vmem:[%s1405 + $0x88] sm:$0xff]
      %v1424 = vld [vmem:[%s1405 + $0x90] sm:$0xff]
      %v1425 = vld [vmem:[%s1405 + $0x98] sm:$0xff]
      %v1426 = vld [vmem:[%s1405 + $0xa0] sm:$0xf]
      %v1427 = vld [vmem:[%s1405 + $0xa8] sm:$0xf]
      %v1428 = vrot.slane %v1172, 2
      %v1429 = vrot.slane %v1177, 2
      %v1430 = vsel %vm568, %v1428, %v1429
      %v1431 = vsel %vm1230, %v1430, 0
      %v1433 = vsel %vm1230, %v1429, 0
      %v1436 = vsel %vm812, %v1426, 0
      %v1439 = vsel %vm812, %v1427, 0
      %1441 = vmatprep.subr.mxu0 0.0
      %1442 = vmatpush1.msra.mxu0 0.0
      %1443 = vmatprep.subr.mxu0 0.0
      %1444 = vmatpush1.msra.mxu0 0.0
      %1445 = vmatprep.subr.mxu0 0.0
      %1446 = vmatpush1.msra.mxu0 0.0
      %1447 = vmatprep.subr.mxu0 0.0
      %1448 = vmatpush1.msra.mxu0 0.0
      %1449 = vmatprep.subr.mxu0 0.0
      %1450 = vmatpush1.msra.mxu0 0.0
      %1451 = vmatprep.subr.mxu0 %v1439
      %1452 = vmatpush1.msra.mxu0 %v1436
      %1453 = vmatprep.subr.mxu0 %v1425
      %1454 = vmatpush1.msra.mxu0 %v1424
      %1455 = vmatprep.subr.mxu0 %v1423
      %1456 = vmatpush1.msra.mxu0 %v1422
      %1457 = vmatprep.subr.mxu0 %v1421
      %1458 = vmatpush1.msra.mxu0 %v1420
      %1459 = vmatprep.subr.mxu0 %v1419
      %1460 = vmatpush1.msra.mxu0 %v1418
      %1461 = vmatprep.subr.mxu0 %v1417
      %1462 = vmatpush1.msra.mxu0 %v1416
      %1463 = vmatprep.subr.mxu0 %v1415
      %1464 = vmatpush1.msra.mxu0 %v1414
      %1465 = vmatprep.subr.mxu0 %v1413
      %1466 = vmatpush1.msra.mxu0 %v1412
      %1467 = vmatprep.subr.mxu0 %v1411
      %1468 = vmatpush1.msra.mxu0 %v1410
      %1469 = vmatprep.subr.mxu0 %v1409
      %1470 = vmatpush1.msra.mxu0 %v1408
      %1471 = vmatprep.subr.mxu0 %v1407
      %1472 = vmatpush1.msra.mxu0 %v1406
      %1473 = vmatprep.subr.mxu0 0.0
      %1474 = vmatpush2.msra.mxu0 0.0
      %1475 = vmatprep.subr.mxu0 0.0
      %1476 = vmatpush2.msra.mxu0 0.0
      %1477 = vmatprep.subr.mxu0 0.0
      %1478 = vmatpush2.msra.mxu0 0.0
      %1479 = vmatprep.subr.mxu0 0.0
      %1480 = vmatpush2.msra.mxu0 0.0
      %1481 = vmatprep.subr.mxu0 0.0
      %1482 = vmatpush2.msra.mxu0 0.0
      %1483 = vmatprep.subr.mxu0 0.0
      %1484 = vmatpush2.msra.mxu0 0.0
      %1485 = vmatprep.subr.mxu0 0.0
      %1486 = vmatpush2.msra.mxu0 0.0
      %1487 = vmatprep.subr.mxu0 0.0
      %1488 = vmatpush2.msra.mxu0 0.0
      %1489 = vmatprep.subr.mxu0 0.0
      %1490 = vmatpush2.msra.mxu0 0.0
      %1491 = vmatprep.subr.mxu0 0.0
      %1492 = vmatpush2.msra.mxu0 0.0
      %1493 = vmatprep.subr.mxu0 0.0
      %1494 = vmatpush2.msra.mxu0 0.0
      %1495 = vmatprep.subr.mxu0 0.0
      %1496 = vmatpush2.msra.mxu0 0.0
      %1497 = vmatprep.subr.mxu0 0.0
      %1498 = vmatpush2.msra.mxu0 0.0
      %1499 = vmatprep.subr.mxu0 0.0
      %1500 = vmatpush2.msra.mxu0 0.0
      %1501 = vmatprep.subr.mxu0 0.0
      %1502 = vmatpush2.msra.mxu0 0.0
      %1503 = vmatprep.subr.mxu0 0.0
      %1504 = vmatpush2.msra.mxu0 0.0
      %1505 = vmatprep.mubr.f32.mxu0 0.0
      %1506 = vmatmul.mubr.f32.gmra.mxu0 %v1431
      %v1507 = vpop.f32.mrf.mxu0
      %v1508 = vadd.f32 0.0, %v1507
      %v1509 = vpop.f32.mrf.mxu0
      %v1510 = vadd.f32 0.0, %v1509
      %1511 = vmatprep.mubr.f32.mxu0 0.0
      %1512 = vmatmul.mubr.f32.gmra.mxu0 %v1433
      %v1513 = vpop.f32.mrf.mxu0
      %v1514 = vadd.f32 0.0, %v1513
      %v1515 = vpop.f32.mrf.mxu0
      %v1516 = vadd.f32 0.0, %v1515
      %1517 = vdwg.mxu0
      %v1518 = vadd.f32 %v1395, %v1508
      %v1519 = vadd.f32 %v1397, %v1510
      %v1520 = vadd.f32 %v1401, %v1514
      %v1521 = vadd.f32 %v1403, %v1516
      %s1522 = scalar_lea.vmem %s5, 528
      %v1523 = vld [vmem:[%s1522] sm:$0xff]
      %v1524 = vld [vmem:[%s1522 + $0x8] sm:$0xff]
      %v1525 = vld [vmem:[%s1522 + $0x10] sm:$0xff]
      %v1526 = vld [vmem:[%s1522 + $0x18] sm:$0xff]
      %v1527 = vld [vmem:[%s1522 + $0x20] sm:$0xff]
      %v1528 = vld [vmem:[%s1522 + $0x28] sm:$0xff]
      %v1529 = vld [vmem:[%s1522 + $0x30] sm:$0xff]
      %v1530 = vld [vmem:[%s1522 + $0x38] sm:$0xff]
      %v1531 = vld [vmem:[%s1522 + $0x40] sm:$0xff]
      %v1532 = vld [vmem:[%s1522 + $0x48] sm:$0xff]
      %v1533 = vld [vmem:[%s1522 + $0x50] sm:$0xff]
      %v1534 = vld [vmem:[%s1522 + $0x58] sm:$0xff]
      %v1535 = vld [vmem:[%s1522 + $0x60] sm:$0xff]
      %v1536 = vld [vmem:[%s1522 + $0x68] sm:$0xff]
      %v1537 = vld [vmem:[%s1522 + $0x70] sm:$0xff]
      %v1538 = vld [vmem:[%s1522 + $0x78] sm:$0xff]
      %v1539 = vld [vmem:[%s1522 + $0x80] sm:$0xff]
      %v1540 = vld [vmem:[%s1522 + $0x88] sm:$0xff]
      %v1541 = vld [vmem:[%s1522 + $0x90] sm:$0xff]
      %v1542 = vld [vmem:[%s1522 + $0x98] sm:$0xff]
      %v1543 = vld [vmem:[%s1522 + $0xa0] sm:$0xf]
      %v1544 = vld [vmem:[%s1522 + $0xa8] sm:$0xf]
      %v1545 = vrot.slane %v1172, 3
      %v1546 = vrot.slane %v1177, 3
      %v1547 = vsel %vm690, %v1545, %v1546
      %v1548 = vsel %vm1230, %v1547, 0
      %v1550 = vsel %vm1230, %v1546, 0
      %v1553 = vsel %vm812, %v1543, 0
      %v1556 = vsel %vm812, %v1544, 0
      %1558 = vmatprep.subr.mxu0 0.0
      %1559 = vmatpush1.msra.mxu0 0.0
      %1560 = vmatprep.subr.mxu0 0.0
      %1561 = vmatpush1.msra.mxu0 0.0
      %1562 = vmatprep.subr.mxu0 0.0
      %1563 = vmatpush1.msra.mxu0 0.0
      %1564 = vmatprep.subr.mxu0 0.0
      %1565 = vmatpush1.msra.mxu0 0.0
      %1566 = vmatprep.subr.mxu0 0.0
      %1567 = vmatpush1.msra.mxu0 0.0
      %1568 = vmatprep.subr.mxu0 %v1556
      %1569 = vmatpush1.msra.mxu0 %v1553
      %1570 = vmatprep.subr.mxu0 %v1542
      %1571 = vmatpush1.msra.mxu0 %v1541
      %1572 = vmatprep.subr.mxu0 %v1540
      %1573 = vmatpush1.msra.mxu0 %v1539
      %1574 = vmatprep.subr.mxu0 %v1538
      %1575 = vmatpush1.msra.mxu0 %v1537
      %1576 = vmatprep.subr.mxu0 %v1536
      %1577 = vmatpush1.msra.mxu0 %v1535
      %1578 = vmatprep.subr.mxu0 %v1534
      %1579 = vmatpush1.msra.mxu0 %v1533
      %1580 = vmatprep.subr.mxu0 %v1532
      %1581 = vmatpush1.msra.mxu0 %v1531
      %1582 = vmatprep.subr.mxu0 %v1530
      %1583 = vmatpush1.msra.mxu0 %v1529
      %1584 = vmatprep.subr.mxu0 %v1528
      %1585 = vmatpush1.msra.mxu0 %v1527
      %1586 = vmatprep.subr.mxu0 %v1526
      %1587 = vmatpush1.msra.mxu0 %v1525
      %1588 = vmatprep.subr.mxu0 %v1524
      %1589 = vmatpush1.msra.mxu0 %v1523
      %1590 = vmatprep.subr.mxu0 0.0
      %1591 = vmatpush2.msra.mxu0 0.0
      %1592 = vmatprep.subr.mxu0 0.0
      %1593 = vmatpush2.msra.mxu0 0.0
      %1594 = vmatprep.subr.mxu0 0.0
      %1595 = vmatpush2.msra.mxu0 0.0
      %1596 = vmatprep.subr.mxu0 0.0
      %1597 = vmatpush2.msra.mxu0 0.0
      %1598 = vmatprep.subr.mxu0 0.0
      %1599 = vmatpush2.msra.mxu0 0.0
      %1600 = vmatprep.subr.mxu0 0.0
      %1601 = vmatpush2.msra.mxu0 0.0
      %1602 = vmatprep.subr.mxu0 0.0
      %1603 = vmatpush2.msra.mxu0 0.0
      %1604 = vmatprep.subr.mxu0 0.0
      %1605 = vmatpush2.msra.mxu0 0.0
      %1606 = vmatprep.subr.mxu0 0.0
      %1607 = vmatpush2.msra.mxu0 0.0
      %1608 = vmatprep.subr.mxu0 0.0
      %1609 = vmatpush2.msra.mxu0 0.0
      %1610 = vmatprep.subr.mxu0 0.0
      %1611 = vmatpush2.msra.mxu0 0.0
      %1612 = vmatprep.subr.mxu0 0.0
      %1613 = vmatpush2.msra.mxu0 0.0
      %1614 = vmatprep.subr.mxu0 0.0
      %1615 = vmatpush2.msra.mxu0 0.0
      %1616 = vmatprep.subr.mxu0 0.0
      %1617 = vmatpush2.msra.mxu0 0.0
      %1618 = vmatprep.subr.mxu0 0.0
      %1619 = vmatpush2.msra.mxu0 0.0
      %1620 = vmatprep.subr.mxu0 0.0
      %1621 = vmatpush2.msra.mxu0 0.0
      %1622 = vmatprep.mubr.f32.mxu0 0.0
      %1623 = vmatmul.mubr.f32.gmra.mxu0 %v1548
      %v1624 = vpop.f32.mrf.mxu0
      %v1625 = vadd.f32 0.0, %v1624
      %v1626 = vpop.f32.mrf.mxu0
      %v1627 = vadd.f32 0.0, %v1626
      %1628 = vmatprep.mubr.f32.mxu0 0.0
      %1629 = vmatmul.mubr.f32.gmra.mxu0 %v1550
      %v1630 = vpop.f32.mrf.mxu0
      %v1631 = vadd.f32 0.0, %v1630
      %v1632 = vpop.f32.mrf.mxu0
      %v1633 = vadd.f32 0.0, %v1632
      %1634 = vdwg.mxu0
      %v1635 = vadd.f32 %v1518, %v1625
      %v1636 = vadd.f32 %v1519, %v1627
      %v1637 = vadd.f32 %v1520, %v1631
      %v1638 = vadd.f32 %v1521, %v1633
      %s1639 = scalar_lea.vmem %s5, 704
      %v1640 = vld [vmem:[%s1639] sm:$0xff]
      %v1641 = vld [vmem:[%s1639 + $0x8] sm:$0xff]
      %v1642 = vld [vmem:[%s1639 + $0x10] sm:$0xff]
      %v1643 = vld [vmem:[%s1639 + $0x18] sm:$0xff]
      %v1644 = vld [vmem:[%s1639 + $0x20] sm:$0xff]
      %v1645 = vld [vmem:[%s1639 + $0x28] sm:$0xff]
      %v1646 = vld [vmem:[%s1639 + $0x30] sm:$0xff]
      %v1647 = vld [vmem:[%s1639 + $0x38] sm:$0xff]
      %v1648 = vld [vmem:[%s1639 + $0x40] sm:$0xff]
      %v1649 = vld [vmem:[%s1639 + $0x48] sm:$0xff]
      %v1650 = vld [vmem:[%s1639 + $0x50] sm:$0xff]
      %v1651 = vld [vmem:[%s1639 + $0x58] sm:$0xff]
      %v1652 = vld [vmem:[%s1639 + $0x60] sm:$0xff]
      %v1653 = vld [vmem:[%s1639 + $0x68] sm:$0xff]
      %v1654 = vld [vmem:[%s1639 + $0x70] sm:$0xff]
      %v1655 = vld [vmem:[%s1639 + $0x78] sm:$0xff]
      %v1656 = vld [vmem:[%s1639 + $0x80] sm:$0xff]
      %v1657 = vld [vmem:[%s1639 + $0x88] sm:$0xff]
      %v1658 = vld [vmem:[%s1639 + $0x90] sm:$0xff]
      %v1659 = vld [vmem:[%s1639 + $0x98] sm:$0xff]
      %v1660 = vld [vmem:[%s1639 + $0xa0] sm:$0xf]
      %v1661 = vld [vmem:[%s1639 + $0xa8] sm:$0xf]
      %v1662 = vrot.slane %v1172, 4
      %v1663 = vrot.slane %v1177, 4
      %v1664 = vsel %vm812, %v1662, %v1663
      %v1665 = vsel %vm1230, %v1664, 0
      %v1667 = vsel %vm1230, %v1663, 0
      %v1670 = vsel %vm812, %v1660, 0
      %v1673 = vsel %vm812, %v1661, 0
      %1675 = vmatprep.subr.mxu0 0.0
      %1676 = vmatpush1.msra.mxu0 0.0
      %1677 = vmatprep.subr.mxu0 0.0
      %1678 = vmatpush1.msra.mxu0 0.0
      %1679 = vmatprep.subr.mxu0 0.0
      %1680 = vmatpush1.msra.mxu0 0.0
      %1681 = vmatprep.subr.mxu0 0.0
      %1682 = vmatpush1.msra.mxu0 0.0
      %1683 = vmatprep.subr.mxu0 0.0
      %1684 = vmatpush1.msra.mxu0 0.0
      %1685 = vmatprep.subr.mxu0 %v1673
      %1686 = vmatpush1.msra.mxu0 %v1670
      %1687 = vmatprep.subr.mxu0 %v1659
      %1688 = vmatpush1.msra.mxu0 %v1658
      %1689 = vmatprep.subr.mxu0 %v1657
      %1690 = vmatpush1.msra.mxu0 %v1656
      %1691 = vmatprep.subr.mxu0 %v1655
      %1692 = vmatpush1.msra.mxu0 %v1654
      %1693 = vmatprep.subr.mxu0 %v1653
      %1694 = vmatpush1.msra.mxu0 %v1652
      %1695 = vmatprep.subr.mxu0 %v1651
      %1696 = vmatpush1.msra.mxu0 %v1650
      %1697 = vmatprep.subr.mxu0 %v1649
      %1698 = vmatpush1.msra.mxu0 %v1648
      %1699 = vmatprep.subr.mxu0 %v1647
      %1700 = vmatpush1.msra.mxu0 %v1646
      %1701 = vmatprep.subr.mxu0 %v1645
      %1702 = vmatpush1.msra.mxu0 %v1644
      %1703 = vmatprep.subr.mxu0 %v1643
      %1704 = vmatpush1.msra.mxu0 %v1642
      %1705 = vmatprep.subr.mxu0 %v1641
      %1706 = vmatpush1.msra.mxu0 %v1640
      %1707 = vmatprep.subr.mxu0 0.0
      %1708 = vmatpush2.msra.mxu0 0.0
      %1709 = vmatprep.subr.mxu0 0.0
      %1710 = vmatpush2.msra.mxu0 0.0
      %1711 = vmatprep.subr.mxu0 0.0
      %1712 = vmatpush2.msra.mxu0 0.0
      %1713 = vmatprep.subr.mxu0 0.0
      %1714 = vmatpush2.msra.mxu0 0.0
      %1715 = vmatprep.subr.mxu0 0.0
      %1716 = vmatpush2.msra.mxu0 0.0
      %1717 = vmatprep.subr.mxu0 0.0
      %1718 = vmatpush2.msra.mxu0 0.0
      %1719 = vmatprep.subr.mxu0 0.0
      %1720 = vmatpush2.msra.mxu0 0.0
      %1721 = vmatprep.subr.mxu0 0.0
      %1722 = vmatpush2.msra.mxu0 0.0
      %1723 = vmatprep.subr.mxu0 0.0
      %1724 = vmatpush2.msra.mxu0 0.0
      %1725 = vmatprep.subr.mxu0 0.0
      %1726 = vmatpush2.msra.mxu0 0.0
      %1727 = vmatprep.subr.mxu0 0.0
      %1728 = vmatpush2.msra.mxu0 0.0
      %1729 = vmatprep.subr.mxu0 0.0
      %1730 = vmatpush2.msra.mxu0 0.0
      %1731 = vmatprep.subr.mxu0 0.0
      %1732 = vmatpush2.msra.mxu0 0.0
      %1733 = vmatprep.subr.mxu0 0.0
      %1734 = vmatpush2.msra.mxu0 0.0
      %1735 = vmatprep.subr.mxu0 0.0
      %1736 = vmatpush2.msra.mxu0 0.0
      %1737 = vmatprep.subr.mxu0 0.0
      %1738 = vmatpush2.msra.mxu0 0.0
      %1739 = vmatprep.mubr.f32.mxu0 0.0
      %1740 = vmatmul.mubr.f32.gmra.mxu0 %v1665
      %v1741 = vpop.f32.mrf.mxu0
      %v1742 = vadd.f32 0.0, %v1741
      %v1743 = vpop.f32.mrf.mxu0
      %v1744 = vadd.f32 0.0, %v1743
      %1745 = vmatprep.mubr.f32.mxu0 0.0
      %1746 = vmatmul.mubr.f32.gmra.mxu0 %v1667
      %v1747 = vpop.f32.mrf.mxu0
      %v1748 = vadd.f32 0.0, %v1747
      %v1749 = vpop.f32.mrf.mxu0
      %v1750 = vadd.f32 0.0, %v1749
      %1751 = vdwg.mxu0
      %v1752 = vadd.f32 %v1635, %v1742
      %v1753 = vadd.f32 %v1636, %v1744
      %v1754 = vadd.f32 %v1637, %v1748
      %v1755 = vadd.f32 %v1638, %v1750
      %v1756 = vld [vmem:[%s6] sm:$0x3]
      %v1758 = vlaneseq
      %v1759 = vshrl.u32 %v1758, 7
      %v1760 = vsub.s32 0, %v1759
      %v1761 = vrot.slane %v1756, %v1760
      %v1762 = vlaneseq
      %v1763 = vshrl.u32 %v1762, 7
      %v1764 = vsub.s32 1, %v1763
      %v1765 = vrot.slane %v1756, %v1764
      %v1768 = vadd.f32 %v1752, %v1761
      %v1769 = vadd.f32 %v1753, %v1765
      %v1770 = vadd.f32 %v1754, %v1761
      %v1771 = vadd.f32 %v1755, %v1765
      %v1772 = vsub.f32 0.0, %v1768
      %v1773 = vsub.f32 0.0, %v1769
      %v1774 = vsub.f32 0.0, %v1770
      %v1775 = vsub.f32 0.0, %v1771
      %v1776 = vmul.f32 %v1772, 1.442695
      %v1777 = vpow.pop %v1776
      %v1778 = vmul.f32 %v1773, 1.442695
      %v1779 = vpow.pop %v1778
      %v1780 = vmul.f32 %v1774, 1.442695
      %v1781 = vpow.pop %v1780
      %v1782 = vmul.f32 %v1775, 1.442695
      %v1783 = vpow.pop %v1782
      %v1784 = vadd.f32 %v1777, 1.0
      %v1785 = vadd.f32 %v1779, 1.0
      %v1786 = vadd.f32 %v1781, 1.0
      %v1787 = vadd.f32 %v1783, 1.0
      %v1788 = vrcp.pop %v1784
      %v1789 = vrcp.pop %v1785
      %v1790 = vrcp.pop %v1786
      %v1791 = vrcp.pop %v1787
      %v1792 = vld [vmem:[%s7] sm:$0x1f]
      %vm1793 = vcmask 80896
      %v1795 = vsel %vm1793, %v1792, 0
      %vm1797 = vcmask 1041408
      %v1799 = vsel %vm1797, %v1790, 0
      %v1802 = vsel %vm1797, %v1791, 0
      %1804 = vmatprep.subr.mxu0 0.0
      %1805 = vmatpush1.msra.mxu0 0.0
      %1806 = vmatprep.subr.mxu0 0.0
      %1807 = vmatpush1.msra.mxu0 0.0
      %1808 = vmatprep.subr.mxu0 0.0
      %1809 = vmatpush1.msra.mxu0 0.0
      %1810 = vmatprep.subr.mxu0 0.0
      %1811 = vmatpush1.msra.mxu0 0.0
      %1812 = vmatprep.subr.mxu0 0.0
      %1813 = vmatpush1.msra.mxu0 0.0
      %1814 = vmatprep.subr.mxu0 0.0
      %1815 = vmatpush1.msra.mxu0 0.0
      %1816 = vmatprep.subr.mxu0 0.0
      %1817 = vmatpush1.msra.mxu0 0.0
      %1818 = vmatprep.subr.mxu0 0.0
      %1819 = vmatpush1.msra.mxu0 0.0
      %1820 = vmatprep.subr.mxu0 0.0
      %1821 = vmatpush1.msra.mxu0 0.0
      %1822 = vmatprep.subr.mxu0 0.0
      %1823 = vmatpush1.msra.mxu0 0.0
      %1824 = vmatprep.subr.mxu0 0.0
      %1825 = vmatpush1.msra.mxu0 0.0
      %1826 = vmatprep.subr.mxu0 0.0
      %1827 = vmatpush1.msra.mxu0 0.0
      %1828 = vmatprep.subr.mxu0 0.0
      %1829 = vmatpush1.msra.mxu0 0.0
      %1830 = vmatprep.subr.mxu0 0.0
      %1831 = vmatpush1.msra.mxu0 0.0
      %1832 = vmatprep.subr.mxu0 %v1802
      %1833 = vmatpush1.msra.mxu0 %v1799
      %1834 = vmatprep.subr.mxu0 %v1789
      %1835 = vmatpush1.msra.mxu0 %v1788
      %1836 = vmatprep.subr.mxu0 0.0
      %1837 = vmatpush2.msra.mxu0 0.0
      %1838 = vmatprep.subr.mxu0 0.0
      %1839 = vmatpush2.msra.mxu0 0.0
      %1840 = vmatprep.subr.mxu0 0.0
      %1841 = vmatpush2.msra.mxu0 0.0
      %1842 = vmatprep.subr.mxu0 0.0
      %1843 = vmatpush2.msra.mxu0 0.0
      %1844 = vmatprep.subr.mxu0 0.0
      %1845 = vmatpush2.msra.mxu0 0.0
      %1846 = vmatprep.subr.mxu0 0.0
      %1847 = vmatpush2.msra.mxu0 0.0
      %1848 = vmatprep.subr.mxu0 0.0
      %1849 = vmatpush2.msra.mxu0 0.0
      %1850 = vmatprep.subr.mxu0 0.0
      %1851 = vmatpush2.msra.mxu0 0.0
      %1852 = vmatprep.subr.mxu0 0.0
      %1853 = vmatpush2.msra.mxu0 0.0
      %1854 = vmatprep.subr.mxu0 0.0
      %1855 = vmatpush2.msra.mxu0 0.0
      %1856 = vmatprep.subr.mxu0 0.0
      %1857 = vmatpush2.msra.mxu0 0.0
      %1858 = vmatprep.subr.mxu0 0.0
      %1859 = vmatpush2.msra.mxu0 0.0
      %1860 = vmatprep.subr.mxu0 0.0
      %1861 = vmatpush2.msra.mxu0 0.0
      %1862 = vmatprep.subr.mxu0 0.0
      %1863 = vmatpush2.msra.mxu0 0.0
      %1864 = vmatprep.subr.mxu0 0.0
      %1865 = vmatpush2.msra.mxu0 0.0
      %1866 = vmatprep.subr.mxu0 0.0
      %1867 = vmatpush2.msra.mxu0 0.0
      %1868 = vmatprep.mubr.f32.mxu0 0.0
      %1869 = vmatmul.mubr.f32.gmra.mxu0 %v1795
      %v1870 = vpop.f32.mrf.mxu0
      %v1871 = vadd.f32 0.0, %v1870
      %v1872 = vpop.f32.mrf.mxu0
      %v1873 = vadd.f32 0.0, %v1872
      %1874 = vdwg.mxu0
      %v1875 = vld [vmem:[%s8] sm:$0xff]
      %v1876 = vld [vmem:[%s8 + $0x8] sm:$0xff]
      %v1877 = vld [vmem:[%s8 + $0x10] sm:$0xff]
      %v1878 = vld [vmem:[%s8 + $0x18] sm:$0xff]
      %v1879 = vld [vmem:[%s8 + $0x20] sm:$0xff]
      %v1880 = vld [vmem:[%s8 + $0x28] sm:$0xff]
      %v1881 = vld [vmem:[%s8 + $0x30] sm:$0xff]
      %v1882 = vld [vmem:[%s8 + $0x38] sm:$0xff]
      %v1883 = vld [vmem:[%s8 + $0x40] sm:$0xff]
      %v1884 = vld [vmem:[%s8 + $0x48] sm:$0xff]
      %v1885 = vld [vmem:[%s8 + $0x50] sm:$0xff]
      %v1886 = vld [vmem:[%s8 + $0x58] sm:$0xff]
      %v1887 = vld [vmem:[%s8 + $0x60] sm:$0xff]
      %v1888 = vld [vmem:[%s8 + $0x68] sm:$0xff]
      %v1889 = vld [vmem:[%s8 + $0x70] sm:$0xff]
      %v1890 = vld [vmem:[%s8 + $0x78] sm:$0xff]
      %v1891 = vld [vmem:[%s8 + $0x80] sm:$0xff]
      %v1892 = vld [vmem:[%s8 + $0x88] sm:$0xff]
      %v1893 = vld [vmem:[%s8 + $0x90] sm:$0xff]
      %v1894 = vld [vmem:[%s8 + $0x98] sm:$0xff]
      %v1896 = vsel %vm364, %v1873, 0
      %1898 = vmatprep.subr.mxu0 0.0
      %1899 = vmatpush1.msra.mxu0 %v1890
      %1900 = vmatprep.subr.mxu0 0.0
      %1901 = vmatpush1.msra.mxu0 %v1889
      %1902 = vmatprep.subr.mxu0 0.0
      %1903 = vmatpush1.msra.mxu0 %v1888
      %1904 = vmatprep.subr.mxu0 0.0
      %1905 = vmatpush1.msra.mxu0 %v1887
      %1906 = vmatprep.subr.mxu0 0.0
      %1907 = vmatpush1.msra.mxu0 %v1886
      %1908 = vmatprep.subr.mxu0 0.0
      %1909 = vmatpush1.msra.mxu0 %v1885
      %1910 = vmatprep.subr.mxu0 0.0
      %1911 = vmatpush1.msra.mxu0 %v1884
      %1912 = vmatprep.subr.mxu0 0.0
      %1913 = vmatpush1.msra.mxu0 %v1883
      %1914 = vmatprep.subr.mxu0 0.0
      %1915 = vmatpush1.msra.mxu0 %v1882
      %1916 = vmatprep.subr.mxu0 0.0
      %1917 = vmatpush1.msra.mxu0 %v1881
      %1918 = vmatprep.subr.mxu0 0.0
      %1919 = vmatpush1.msra.mxu0 %v1880
      %1920 = vmatprep.subr.mxu0 0.0
      %1921 = vmatpush1.msra.mxu0 %v1879
      %1922 = vmatprep.subr.mxu0 0.0
      %1923 = vmatpush1.msra.mxu0 %v1878
      %1924 = vmatprep.subr.mxu0 0.0
      %1925 = vmatpush1.msra.mxu0 %v1877
      %1926 = vmatprep.subr.mxu0 0.0
      %1927 = vmatpush1.msra.mxu0 %v1876
      %1928 = vmatprep.subr.mxu0 0.0
      %1929 = vmatpush1.msra.mxu0 %v1875
      %1930 = vmatprep.subr.mxu0 0.0
      %1931 = vmatpush2.msra.mxu0 0.0
      %1932 = vmatprep.subr.mxu0 0.0
      %1933 = vmatpush2.msra.mxu0 0.0
      %1934 = vmatprep.subr.mxu0 0.0
      %1935 = vmatpush2.msra.mxu0 0.0
      %1936 = vmatprep.subr.mxu0 0.0
      %1937 = vmatpush2.msra.mxu0 0.0
      %1938 = vmatprep.subr.mxu0 0.0
      %1939 = vmatpush2.msra.mxu0 0.0
      %1940 = vmatprep.subr.mxu0 0.0
      %1941 = vmatpush2.msra.mxu0 0.0
      %1942 = vmatprep.subr.mxu0 0.0
      %1943 = vmatpush2.msra.mxu0 0.0
      %1944 = vmatprep.subr.mxu0 0.0
      %1945 = vmatpush2.msra.mxu0 0.0
      %1946 = vmatprep.subr.mxu0 0.0
      %1947 = vmatpush2.msra.mxu0 0.0
      %1948 = vmatprep.subr.mxu0 0.0
      %1949 = vmatpush2.msra.mxu0 0.0
      %1950 = vmatprep.subr.mxu0 0.0
      %1951 = vmatpush2.msra.mxu0 0.0
      %1952 = vmatprep.subr.mxu0 0.0
      %1953 = vmatpush2.msra.mxu0 0.0
      %1954 = vmatprep.subr.mxu0 0.0
      %1955 = vmatpush2.msra.mxu0 %v1894
      %1956 = vmatprep.subr.mxu0 0.0
      %1957 = vmatpush2.msra.mxu0 %v1893
      %1958 = vmatprep.subr.mxu0 0.0
      %1959 = vmatpush2.msra.mxu0 %v1892
      %1960 = vmatprep.subr.mxu0 0.0
      %1961 = vmatpush2.msra.mxu0 %v1891
      %1962 = vmatprep.mubr.f32.mxu0 %v1896
      %1963 = vmatmul.mubr.f32.gmra.mxu0 %v1871
      %v1964 = vpop.f32.mrf.mxu0
      %v1965 = vadd.f32 0.0, %v1964
      %v1966 = vpop.f32.mrf.mxu0
      %1967 = vdwg.mxu0
      %vm1968 = vcmask 651264
      %1969 = vst.msk [vmem:[%s330] sm:$0x1f] %vm1968, %v1965
      %p1970 = scmp.lt.s32.totalorder %s20, 1
      %s1971 = scalar_select %p1970, %s20, 1
      %s1972 = smul.addr %s1971, 8
      %s1973 = scalar_lea.vmem %s9, %s1972
      // Predicated region
      $region57: #{lenet_forward.2} parent=55 // pred_check
        %p1974 = pneg %p232
      $region58: #{lenet_forward.2} parent=55 // pred_check_branch
        %1976 = sbr.rel (%p1974) target = $region60
      $region59: #{lenet_forward.2} parent=55 // pred_region
        _
      $region60: #{lenet_forward.2} parent=55 // pred_fallthru
        _
    $region56: #{lenet_forward.2} parent=5 // pred_fallthru
      _
    %p1977 = scmp.le.s32.totalorder 2, %s15
    // Predicated region
    $region61: #{lenet_forward.2} parent=5 // pred_check
      %p1978 = pneg %p1977
    $region62: #{lenet_forward.2} parent=5 // pred_check_branch
      %1980 = sbr.rel (%p1978) target = $region64
    $region63: #{lenet_forward.2} parent=5 // pred_region
      %s1981 = ssub.s32 %s15, 2
      // Predicated region
      $region65: #{lenet_forward.2} parent=63 // pred_check
        %p1982 = pneg %p238
      $region66: #{lenet_forward.2} parent=63 // pred_check_branch
        %1984 = sbr.rel (%p1982) target = $region68
      $region67: #{lenet_forward.2} parent=63 // pred_region
        %p1985 = scmp.lt.s32.totalorder %s21, 1
        %s1986 = scalar_select %p1985, %s21, 1
        %s1987 = smul.addr %s1986, 8
        %s1988 = scalar_lea.vmem %s9, %s1987
      $region68: #{lenet_forward.2} parent=63 // pred_fallthru
        _
    $region64: #{lenet_forward.2} parent=5 // pred_fallthru
      _
  $region6: #{lenet_forward.2} parent=0 // loop_footer
    %s19 = sadd.s32 1, %s15
  $region7: #{lenet_forward.2} parent=0 // loop_footer_branch
    %14 = sbr.rel target = $region3
  $region8: #{lenet_forward.2} parent=0 // loop_exit
    _

</llo_original>
